<compile_context>
chip_gen: v5e
topology: v5e:2x2
jax: 0.10.0
libtpu: 0.0.40
codegen_flags: <defaults>
</compile_context>

<pallas_src>
import jax
import jax.numpy as jnp
from jax.experimental import pallas as pl
from jax.experimental.pallas import tpu as pltpu

LANE = 128
SUBLANE = 8


def _sigmoid_ref(x):
    # Reference formulation (matches PyTorch's logistic sigmoid).
    return 1.0 / (1.0 + jnp.exp(-x))


def _sigmoid_fast(x):
    # sigmoid(x) == 0.5 * tanh(0.5 * x) + 0.5  (exact identity): one EUP tanh
    # plus one VPU FMA instead of exp -> add -> divide on the serial chain.
    return 0.5 * jnp.tanh(0.5 * x) + 0.5


def lstm_fc_kernel(xg_ref, h0_ref, c0_ref, w_hh_ref, w_fc_ref, b_fc_ref,
                   out_ref, hn_ref, cn_ref):
    """Single-program LSTM recurrence + fused FC epilogue.

    xg_ref  : (T, B_pad, 4*H_pad)  x_t @ W_ih^T + b_ih + b_hh, time-major.
              Gate g occupies lanes [g*H_pad, g*H_pad + H) of its own 128-lane
              tile; padded lanes are zero.
    h0_ref  : (B_pad, H_pad)   initial hidden state (padded rows/lanes zero)
    c0_ref  : (B_pad, H_pad)   initial cell state
    w_hh_ref: (H_pad, 4*H_pad) W_hh^T, zero rows/columns in the padding
    w_fc_ref: (H_pad, O_pad)   W_fc^T, zero padded
    b_fc_ref: (1, O_pad)
    out_ref : (T*B_pad, O_pad) fc(h_t) slab, TIME-major rows (row = t*B_pad + b)
    hn_ref  : (B_pad, H_pad)   final hidden state
    cn_ref  : (B_pad, H_pad)   final cell state
    """
    T = xg_ref.shape[0]
    Hp = h0_ref.shape[1]

    h = h0_ref[...]
    c = c0_ref[...]
    w_hh = w_hh_ref[...]

    hs = []
    # Statically unrolled recurrence: one chained MXU matmul per step; every
    # gate slice is a lane-aligned full-tile slice; h_t stays in vregs.
    for t in range(T):
        gates = xg_ref[t] + jnp.dot(h, w_hh, preferred_element_type=jnp.float32)
        i_g = _sigmoid_fast(gates[:, 0 * Hp:1 * Hp])
        f_g = _sigmoid_fast(gates[:, 1 * Hp:2 * Hp])
        g_g = jnp.tanh(gates[:, 2 * Hp:3 * Hp])
        o_g = _sigmoid_fast(gates[:, 3 * Hp:4 * Hp])
        c = f_g * c + i_g * g_g
        h = o_g * jnp.tanh(c)
        hs.append(h)

    hn_ref[...] = h
    cn_ref[...] = c

    # FC epilogue fused into one matmul: free sublane-axis concat of the
    # in-register (8,128) h_t tiles (time-major), one MXU push, one hoisted
    # bias broadcast, one unmasked lane-dense slab store.
    hs_tm = jnp.concatenate(hs, axis=0)                    # (T*B_pad, H_pad)
    out_ref[...] = (
        jnp.dot(hs_tm, w_fc_ref[...], preferred_element_type=jnp.float32)
        + b_fc_ref[...]
    )


def vanilla_lstm_forward(tokens, hidden, kparams):
    """Mirrors Vanilla_LSTM.forward(x, hidden) for num_layers == 1.

    tokens : (B, T) int32 token ids
    hidden : (h0, c0), each (num_layers=1, B, H) float32
    returns (out (B*T, O), (h_n (1,B,H), c_n (1,B,H)))
    """
    h0, c0 = hidden
    B, T = tokens.shape
    H = kparams["hidden_dim"]
    O = kparams["out_dim"]
    Hp = kparams["w_hh_t_pad"].shape[0]
    o_pad = kparams["w_fc_t_pad"].shape[1]
    Bp = ((B + SUBLANE - 1) // SUBLANE) * SUBLANE   # pad batch to a sublane tile

    # Pad the batch with token 0 / zero state: batch rows never mix in an LSTM,
    # so padded rows are dead weight that is sliced off below.
    tok_p = jnp.zeros((Bp, T), jnp.int32).at[:B, :].set(tokens)
    # Time-major gather of the pre-projected, lane-padded gate inputs:
    # (T, Bp, 4*Hp).  (W_ih + both biases were folded into the table.)
    xg = kparams["embed_gates_pad"][tok_p.T]
    h0_p = jnp.zeros((Bp, Hp), jnp.float32).at[:B, :H].set(h0[0])
    c0_p = jnp.zeros((Bp, Hp), jnp.float32).at[:B, :H].set(c0[0])

    out_tm, hn_p, cn_p = pl.pallas_call(
        lstm_fc_kernel,
        out_shape=(
            jax.ShapeDtypeStruct((T * Bp, o_pad), jnp.float32),
            jax.ShapeDtypeStruct((Bp, Hp), jnp.float32),
            jax.ShapeDtypeStruct((Bp, Hp), jnp.float32),
        ),
        in_specs=[pl.BlockSpec(memory_space=pltpu.MemorySpace.VMEM)] * 6,
        out_specs=(
            pl.BlockSpec(memory_space=pltpu.MemorySpace.VMEM),
            pl.BlockSpec(memory_space=pltpu.MemorySpace.VMEM),
            pl.BlockSpec(memory_space=pltpu.MemorySpace.VMEM),
        ),
        compiler_params=pltpu.CompilerParams(
            # < 1 MiB of live VMEM here; keep the limit explicit anyway so the
            # kernel stays above v5e's 16 MiB scoped default when scaled up.
            vmem_limit_bytes=32 * 1024 * 1024,
        ),
    )(xg, h0_p, c0_p, kparams["w_hh_t_pad"], kparams["w_fc_t_pad"],
      kparams["b_fc_pad"])

    # Time-major (T, Bp, o_pad) slab -> batch-major (B*T, O) rows: pure
    # wrapper-side layout plumbing on a tiny array.
    out = (out_tm.reshape(T, Bp, o_pad)[:, :B, :O]
           .transpose(1, 0, 2)
           .reshape(B * T, O))
    h_n = hn_p[:B, :H][None]
    c_n = cn_p[:B, :H][None]
    return out, (h_n, c_n)


def reference_forward(tokens, hidden, params):
    """Pure-JAX reference matching PyTorch nn.LSTM semantics (num_layers=1)."""
    emb = params["embed"][tokens]          # (B, T, H)
    B, T, H = emb.shape
    h, c = hidden[0][0], hidden[1][0]
    w_ih_t = params["w_ih"].T              # (H, 4H)
    w_hh_t = params["w_hh"].T              # (H, 4H)
    b = params["b_ih"] + params["b_hh"]
    hs = []
    for t in range(T):
        gates = emb[:, t] @ w_ih_t + h @ w_hh_t + b
        i_g = _sigmoid_ref(gates[:, 0 * H:1 * H])
        f_g = _sigmoid_ref(gates[:, 1 * H:2 * H])
        g_g = jnp.tanh(gates[:, 2 * H:3 * H])
        o_g = _sigmoid_ref(gates[:, 3 * H:4 * H])
        c = f_g * c + i_g * g_g
        h = o_g * jnp.tanh(c)
        hs.append(h)
    lstm_out = jnp.stack(hs, axis=1)       # (B, T, H) batch-first
    out = lstm_out.reshape(B * T, H) @ params["w_fc"].T + params["b_fc"]
    return out, (h[None], c[None])


def init_params(key, input_size, hidden_size, output_size):
    ks = jax.random.split(key, 7)
    bound = 1.0 / jnp.sqrt(hidden_size)
    H4 = 4 * hidden_size
    return {
        # nn.Embedding default: N(0, 1)
        "embed": jax.random.normal(ks[0], (input_size, hidden_size), jnp.float32),
        # nn.LSTM / nn.Linear defaults: U(-1/sqrt(H), 1/sqrt(H)); gate order i,f,g,o
        "w_ih": jax.random.uniform(ks[1], (H4, hidden_size), jnp.float32, -bound, bound),
        "w_hh": jax.random.uniform(ks[2], (H4, hidden_size), jnp.float32, -bound, bound),
        "b_ih": jax.random.uniform(ks[3], (H4,), jnp.float32, -bound, bound),
        "b_hh": jax.random.uniform(ks[4], (H4,), jnp.float32, -bound, bound),
        "w_fc": jax.random.uniform(ks[5], (output_size, hidden_size), jnp.float32, -bound, bound),
        "b_fc": jax.random.uniform(ks[6], (output_size,), jnp.float32, -bound, bound),
    }


def prepare_kernel_params(params, lane=LANE):
    """One-time param prep:
      * fold the input projection (W_ih) and both biases into the embedding,
      * lane-pad the gate axis so every gate owns a full 128-lane tile,
      * lane-pad the hidden axis (zero rows keep padded lanes exactly zero),
      * transpose + lane-pad the recurrent and FC weights.
    """
    H = params["w_hh"].shape[1]
    O = params["w_fc"].shape[0]
    V = params["embed"].shape[0]
    Hp = ((H + lane - 1) // lane) * lane          # 128 for H=32
    Op = ((O + lane - 1) // lane) * lane          # 128 for O=10

    # embed_gates[v, g*H:(g+1)*H] = embed[v] @ W_ih^T + b_ih + b_hh  -> (V, 4H)
    eg = params["embed"] @ params["w_ih"].T + (params["b_ih"] + params["b_hh"])
    w_hh_t = params["w_hh"].T                     # (H, 4H)

    embed_gates_pad = jnp.zeros((V, 4 * Hp), jnp.float32)
    w_hh_t_pad = jnp.zeros((Hp, 4 * Hp), jnp.float32)
    for g in range(4):
        embed_gates_pad = embed_gates_pad.at[:, g * Hp:g * Hp + H].set(
            eg[:, g * H:(g + 1) * H])
        w_hh_t_pad = w_hh_t_pad.at[:H, g * Hp:g * Hp + H].set(
            w_hh_t[:, g * H:(g + 1) * H])

    w_fc_t_pad = jnp.zeros((Hp, Op), jnp.float32).at[:H, :O].set(params["w_fc"].T)
    b_fc_pad = jnp.zeros((1, Op), jnp.float32).at[:, :O].set(params["b_fc"])
    return {
        "embed_gates_pad": embed_gates_pad,   # (V, 4*Hp)
        "w_hh_t_pad": w_hh_t_pad,             # (Hp, 4*Hp)
        "w_fc_t_pad": w_fc_t_pad,             # (Hp, Op)
        "b_fc_pad": b_fc_pad,                 # (1, Op)
        "hidden_dim": int(H),
        "out_dim": int(O),
    }


if __name__ == "__main__":
    input_size = 50      # vocab
    hidden_size = 32
    output_size = 10
    num_layers = 1
    batch = 2
    seq = 8

    key = jax.random.PRNGKey(0)
    pkey, tkey = jax.random.split(key)
    params = init_params(pkey, input_size, hidden_size, output_size)
    kparams = prepare_kernel_params(params)

    tokens = jax.random.randint(tkey, (batch, seq), 0, input_size, dtype=jnp.int32)
    hidden0 = (jnp.zeros((num_layers, batch, hidden_size), jnp.float32),
               jnp.zeros((num_layers, batch, hidden_size), jnp.float32))

    out, (h_n, c_n) = vanilla_lstm_forward(tokens, hidden0, kparams)
    out = jax.block_until_ready(out)
    h_n = jax.block_until_ready(h_n)
    c_n = jax.block_until_ready(c_n)

    ref_out, (ref_h, ref_c) = reference_forward(tokens, hidden0, params)
    assert out.shape == (batch * seq, output_size)
    assert h_n.shape == (num_layers, batch, hidden_size)
    assert c_n.shape == (num_layers, batch, hidden_size)
    # Tolerance: kernel sigmoid uses the EUP-tanh identity 0.5*tanh(0.5x)+0.5
    # while the reference uses the exp-based logistic; allow for transcendental
    # approximation differences accumulating over the 8-step recurrence.
    tol = 1e-3
    assert jnp.allclose(out, ref_out, atol=tol, rtol=tol), \
        f"max |diff| = {float(jnp.max(jnp.abs(out - ref_out)))}"
    assert jnp.allclose(h_n, ref_h, atol=tol, rtol=tol)
    assert jnp.allclose(c_n, ref_c, atol=tol, rtol=tol)

    print("KERNEL_OK")
</pallas_src>

<mosaic_0001>
module attributes {stable_mosaic.version = 11 : i64} {
  func.func @lstm_fc_kernel(%arg0: memref<8x8x512xf32, #tpu.memory_space<vmem>>, %arg1: memref<8x128xf32, #tpu.memory_space<vmem>>, %arg2: memref<8x128xf32, #tpu.memory_space<vmem>>, %arg3: memref<128x512xf32, #tpu.memory_space<vmem>>, %arg4: memref<128x128xf32, #tpu.memory_space<vmem>>, %arg5: memref<1x128xf32, #tpu.memory_space<vmem>>, %arg6: memref<64x128xf32, #tpu.memory_space<vmem>>, %arg7: memref<8x128xf32, #tpu.memory_space<vmem>>, %arg8: memref<8x128xf32, #tpu.memory_space<vmem>>) attributes {dimension_semantics = [], scalar_prefetch = 0 : i64, scratch_operands = 0 : i64, tpu.core_type = #tpu.core_type<tc>} {
    %c0 = arith.constant 0 : index
    %c0_0 = arith.constant 0 : index
    %0 = vector.load %arg1[%c0, %c0_0] : memref<8x128xf32, #tpu.memory_space<vmem>>, vector<8x128xf32>
    %c0_1 = arith.constant 0 : index
    %c0_2 = arith.constant 0 : index
    %1 = vector.load %arg2[%c0_1, %c0_2] : memref<8x128xf32, #tpu.memory_space<vmem>>, vector<8x128xf32>
    %c0_3 = arith.constant 0 : index
    %c0_4 = arith.constant 0 : index
    %2 = vector.load %arg3[%c0_3, %c0_4] : memref<128x512xf32, #tpu.memory_space<vmem>>, vector<128x512xf32>
    %c0_5 = arith.constant 0 : index
    %c0_6 = arith.constant 0 : index
    %c0_7 = arith.constant 0 : index
    %3 = vector.load %arg0[%c0_5, %c0_6, %c0_7] : memref<8x8x512xf32, #tpu.memory_space<vmem>>, vector<1x8x512xf32>
    %4 = vector.shape_cast %3 : vector<1x8x512xf32> to vector<8x512xf32>
    %cst = arith.constant dense<0.000000e+00> : vector<8x512xf32>
    %5 = tpu.matmul %0, %2, %cst {dimension_numbers = #tpu.dot_dimension_numbers<[1], [0], [0], [1], [0, 0, 1, 1], [], []>} : vector<8x128xf32>, vector<128x512xf32>, vector<8x512xf32> -> vector<8x512xf32>
    %6 = arith.addf %4, %5 : vector<8x512xf32>
    %7 = vector.extract_strided_slice %6 {offsets = [0, 0], sizes = [8, 128], strides = [1, 1]} : vector<8x512xf32> to vector<8x128xf32>
    %cst_8 = arith.constant 5.000000e-01 : f32
    %8 = vector.broadcast %cst_8 : f32 to vector<8x128xf32>
    %9 = arith.mulf %8, %7 : vector<8x128xf32>
    %10 = math.tanh %9 : vector<8x128xf32>
    %cst_9 = arith.constant 5.000000e-01 : f32
    %11 = vector.broadcast %cst_9 : f32 to vector<8x128xf32>
    %12 = arith.mulf %11, %10 : vector<8x128xf32>
    %cst_10 = arith.constant 5.000000e-01 : f32
    %13 = vector.broadcast %cst_10 : f32 to vector<8x128xf32>
    %14 = arith.addf %12, %13 : vector<8x128xf32>
    %15 = vector.extract_strided_slice %6 {offsets = [0, 128], sizes = [8, 128], strides = [1, 1]} : vector<8x512xf32> to vector<8x128xf32>
    %cst_11 = arith.constant 5.000000e-01 : f32
    %16 = vector.broadcast %cst_11 : f32 to vector<8x128xf32>
    %17 = arith.mulf %16, %15 : vector<8x128xf32>
    %18 = math.tanh %17 : vector<8x128xf32>
    %cst_12 = arith.constant 5.000000e-01 : f32
    %19 = vector.broadcast %cst_12 : f32 to vector<8x128xf32>
    %20 = arith.mulf %19, %18 : vector<8x128xf32>
    %cst_13 = arith.constant 5.000000e-01 : f32
    %21 = vector.broadcast %cst_13 : f32 to vector<8x128xf32>
    %22 = arith.addf %20, %21 : vector<8x128xf32>
    %23 = vector.extract_strided_slice %6 {offsets = [0, 256], sizes = [8, 128], strides = [1, 1]} : vector<8x512xf32> to vector<8x128xf32>
    %24 = math.tanh %23 : vector<8x128xf32>
    %25 = vector.extract_strided_slice %6 {offsets = [0, 384], sizes = [8, 128], strides = [1, 1]} : vector<8x512xf32> to vector<8x128xf32>
    %cst_14 = arith.constant 5.000000e-01 : f32
    %26 = vector.broadcast %cst_14 : f32 to vector<8x128xf32>
    %27 = arith.mulf %26, %25 : vector<8x128xf32>
    %28 = math.tanh %27 : vector<8x128xf32>
    %cst_15 = arith.constant 5.000000e-01 : f32
    %29 = vector.broadcast %cst_15 : f32 to vector<8x128xf32>
    %30 = arith.mulf %29, %28 : vector<8x128xf32>
    %cst_16 = arith.constant 5.000000e-01 : f32
    %31 = vector.broadcast %cst_16 : f32 to vector<8x128xf32>
    %32 = arith.addf %30, %31 : vector<8x128xf32>
    %33 = arith.mulf %22, %1 : vector<8x128xf32>
    %34 = arith.mulf %14, %24 : vector<8x128xf32>
    %35 = arith.addf %33, %34 : vector<8x128xf32>
    %36 = math.tanh %35 : vector<8x128xf32>
    %37 = arith.mulf %32, %36 : vector<8x128xf32>
    %c1 = arith.constant 1 : index
    %c0_17 = arith.constant 0 : index
    %c0_18 = arith.constant 0 : index
    %38 = vector.load %arg0[%c1, %c0_17, %c0_18] : memref<8x8x512xf32, #tpu.memory_space<vmem>>, vector<1x8x512xf32>
    %39 = vector.shape_cast %38 : vector<1x8x512xf32> to vector<8x512xf32>
    %cst_19 = arith.constant dense<0.000000e+00> : vector<8x512xf32>
    %40 = tpu.matmul %37, %2, %cst_19 {dimension_numbers = #tpu.dot_dimension_numbers<[1], [0], [0], [1], [0, 0, 1, 1], [], []>} : vector<8x128xf32>, vector<128x512xf32>, vector<8x512xf32> -> vector<8x512xf32>
    %41 = arith.addf %39, %40 : vector<8x512xf32>
    %42 = vector.extract_strided_slice %41 {offsets = [0, 0], sizes = [8, 128], strides = [1, 1]} : vector<8x512xf32> to vector<8x128xf32>
    %cst_20 = arith.constant 5.000000e-01 : f32
    %43 = vector.broadcast %cst_20 : f32 to vector<8x128xf32>
    %44 = arith.mulf %43, %42 : vector<8x128xf32>
    %45 = math.tanh %44 : vector<8x128xf32>
    %cst_21 = arith.constant 5.000000e-01 : f32
    %46 = vector.broadcast %cst_21 : f32 to vector<8x128xf32>
    %47 = arith.mulf %46, %45 : vector<8x128xf32>
    %cst_22 = arith.constant 5.000000e-01 : f32
    %48 = vector.broadcast %cst_22 : f32 to vector<8x128xf32>
    %49 = arith.addf %47, %48 : vector<8x128xf32>
    %50 = vector.extract_strided_slice %41 {offsets = [0, 128], sizes = [8, 128], strides = [1, 1]} : vector<8x512xf32> to vector<8x128xf32>
    %cst_23 = arith.constant 5.000000e-01 : f32
    %51 = vector.broadcast %cst_23 : f32 to vector<8x128xf32>
    %52 = arith.mulf %51, %50 : vector<8x128xf32>
    %53 = math.tanh %52 : vector<8x128xf32>
    %cst_24 = arith.constant 5.000000e-01 : f32
    %54 = vector.broadcast %cst_24 : f32 to vector<8x128xf32>
    %55 = arith.mulf %54, %53 : vector<8x128xf32>
    %cst_25 = arith.constant 5.000000e-01 : f32
    %56 = vector.broadcast %cst_25 : f32 to vector<8x128xf32>
    %57 = arith.addf %55, %56 : vector<8x128xf32>
    %58 = vector.extract_strided_slice %41 {offsets = [0, 256], sizes = [8, 128], strides = [1, 1]} : vector<8x512xf32> to vector<8x128xf32>
    %59 = math.tanh %58 : vector<8x128xf32>
    %60 = vector.extract_strided_slice %41 {offsets = [0, 384], sizes = [8, 128], strides = [1, 1]} : vector<8x512xf32> to vector<8x128xf32>
    %cst_26 = arith.constant 5.000000e-01 : f32
    %61 = vector.broadcast %cst_26 : f32 to vector<8x128xf32>
    %62 = arith.mulf %61, %60 : vector<8x128xf32>
    %63 = math.tanh %62 : vector<8x128xf32>
    %cst_27 = arith.constant 5.000000e-01 : f32
    %64 = vector.broadcast %cst_27 : f32 to vector<8x128xf32>
    %65 = arith.mulf %64, %63 : vector<8x128xf32>
    %cst_28 = arith.constant 5.000000e-01 : f32
    %66 = vector.broadcast %cst_28 : f32 to vector<8x128xf32>
    %67 = arith.addf %65, %66 : vector<8x128xf32>
    %68 = arith.mulf %57, %35 : vector<8x128xf32>
    %69 = arith.mulf %49, %59 : vector<8x128xf32>
    %70 = arith.addf %68, %69 : vector<8x128xf32>
    %71 = math.tanh %70 : vector<8x128xf32>
    %72 = arith.mulf %67, %71 : vector<8x128xf32>
    %c2 = arith.constant 2 : index
    %c0_29 = arith.constant 0 : index
    %c0_30 = arith.constant 0 : index
    %73 = vector.load %arg0[%c2, %c0_29, %c0_30] : memref<8x8x512xf32, #tpu.memory_space<vmem>>, vector<1x8x512xf32>
    %74 = vector.shape_cast %73 : vector<1x8x512xf32> to vector<8x512xf32>
    %cst_31 = arith.constant dense<0.000000e+00> : vector<8x512xf32>
    %75 = tpu.matmul %72, %2, %cst_31 {dimension_numbers = #tpu.dot_dimension_numbers<[1], [0], [0], [1], [0, 0, 1, 1], [], []>} : vector<8x128xf32>, vector<128x512xf32>, vector<8x512xf32> -> vector<8x512xf32>
    %76 = arith.addf %74, %75 : vector<8x512xf32>
    %77 = vector.extract_strided_slice %76 {offsets = [0, 0], sizes = [8, 128], strides = [1, 1]} : vector<8x512xf32> to vector<8x128xf32>
    %cst_32 = arith.constant 5.000000e-01 : f32
    %78 = vector.broadcast %cst_32 : f32 to vector<8x128xf32>
    %79 = arith.mulf %78, %77 : vector<8x128xf32>
    %80 = math.tanh %79 : vector<8x128xf32>
    %cst_33 = arith.constant 5.000000e-01 : f32
    %81 = vector.broadcast %cst_33 : f32 to vector<8x128xf32>
    %82 = arith.mulf %81, %80 : vector<8x128xf32>
    %cst_34 = arith.constant 5.000000e-01 : f32
    %83 = vector.broadcast %cst_34 : f32 to vector<8x128xf32>
    %84 = arith.addf %82, %83 : vector<8x128xf32>
    %85 = vector.extract_strided_slice %76 {offsets = [0, 128], sizes = [8, 128], strides = [1, 1]} : vector<8x512xf32> to vector<8x128xf32>
    %cst_35 = arith.constant 5.000000e-01 : f32
    %86 = vector.broadcast %cst_35 : f32 to vector<8x128xf32>
    %87 = arith.mulf %86, %85 : vector<8x128xf32>
    %88 = math.tanh %87 : vector<8x128xf32>
    %cst_36 = arith.constant 5.000000e-01 : f32
    %89 = vector.broadcast %cst_36 : f32 to vector<8x128xf32>
    %90 = arith.mulf %89, %88 : vector<8x128xf32>
    %cst_37 = arith.constant 5.000000e-01 : f32
    %91 = vector.broadcast %cst_37 : f32 to vector<8x128xf32>
    %92 = arith.addf %90, %91 : vector<8x128xf32>
    %93 = vector.extract_strided_slice %76 {offsets = [0, 256], sizes = [8, 128], strides = [1, 1]} : vector<8x512xf32> to vector<8x128xf32>
    %94 = math.tanh %93 : vector<8x128xf32>
    %95 = vector.extract_strided_slice %76 {offsets = [0, 384], sizes = [8, 128], strides = [1, 1]} : vector<8x512xf32> to vector<8x128xf32>
    %cst_38 = arith.constant 5.000000e-01 : f32
    %96 = vector.broadcast %cst_38 : f32 to vector<8x128xf32>
    %97 = arith.mulf %96, %95 : vector<8x128xf32>
    %98 = math.tanh %97 : vector<8x128xf32>
    %cst_39 = arith.constant 5.000000e-01 : f32
    %99 = vector.broadcast %cst_39 : f32 to vector<8x128xf32>
    %100 = arith.mulf %99, %98 : vector<8x128xf32>
    %cst_40 = arith.constant 5.000000e-01 : f32
    %101 = vector.broadcast %cst_40 : f32 to vector<8x128xf32>
    %102 = arith.addf %100, %101 : vector<8x128xf32>
    %103 = arith.mulf %92, %70 : vector<8x128xf32>
    %104 = arith.mulf %84, %94 : vector<8x128xf32>
    %105 = arith.addf %103, %104 : vector<8x128xf32>
    %106 = math.tanh %105 : vector<8x128xf32>
    %107 = arith.mulf %102, %106 : vector<8x128xf32>
    %c3 = arith.constant 3 : index
    %c0_41 = arith.constant 0 : index
    %c0_42 = arith.constant 0 : index
    %108 = vector.load %arg0[%c3, %c0_41, %c0_42] : memref<8x8x512xf32, #tpu.memory_space<vmem>>, vector<1x8x512xf32>
    %109 = vector.shape_cast %108 : vector<1x8x512xf32> to vector<8x512xf32>
    %cst_43 = arith.constant dense<0.000000e+00> : vector<8x512xf32>
    %110 = tpu.matmul %107, %2, %cst_43 {dimension_numbers = #tpu.dot_dimension_numbers<[1], [0], [0], [1], [0, 0, 1, 1], [], []>} : vector<8x128xf32>, vector<128x512xf32>, vector<8x512xf32> -> vector<8x512xf32>
    %111 = arith.addf %109, %110 : vector<8x512xf32>
    %112 = vector.extract_strided_slice %111 {offsets = [0, 0], sizes = [8, 128], strides = [1, 1]} : vector<8x512xf32> to vector<8x128xf32>
    %cst_44 = arith.constant 5.000000e-01 : f32
    %113 = vector.broadcast %cst_44 : f32 to vector<8x128xf32>
    %114 = arith.mulf %113, %112 : vector<8x128xf32>
    %115 = math.tanh %114 : vector<8x128xf32>
    %cst_45 = arith.constant 5.000000e-01 : f32
    %116 = vector.broadcast %cst_45 : f32 to vector<8x128xf32>
    %117 = arith.mulf %116, %115 : vector<8x128xf32>
    %cst_46 = arith.constant 5.000000e-01 : f32
    %118 = vector.broadcast %cst_46 : f32 to vector<8x128xf32>
    %119 = arith.addf %117, %118 : vector<8x128xf32>
    %120 = vector.extract_strided_slice %111 {offsets = [0, 128], sizes = [8, 128], strides = [1, 1]} : vector<8x512xf32> to vector<8x128xf32>
    %cst_47 = arith.constant 5.000000e-01 : f32
    %121 = vector.broadcast %cst_47 : f32 to vector<8x128xf32>
    %122 = arith.mulf %121, %120 : vector<8x128xf32>
    %123 = math.tanh %122 : vector<8x128xf32>
    %cst_48 = arith.constant 5.000000e-01 : f32
    %124 = vector.broadcast %cst_48 : f32 to vector<8x128xf32>
    %125 = arith.mulf %124, %123 : vector<8x128xf32>
    %cst_49 = arith.constant 5.000000e-01 : f32
    %126 = vector.broadcast %cst_49 : f32 to vector<8x128xf32>
    %127 = arith.addf %125, %126 : vector<8x128xf32>
    %128 = vector.extract_strided_slice %111 {offsets = [0, 256], sizes = [8, 128], strides = [1, 1]} : vector<8x512xf32> to vector<8x128xf32>
    %129 = math.tanh %128 : vector<8x128xf32>
    %130 = vector.extract_strided_slice %111 {offsets = [0, 384], sizes = [8, 128], strides = [1, 1]} : vector<8x512xf32> to vector<8x128xf32>
    %cst_50 = arith.constant 5.000000e-01 : f32
    %131 = vector.broadcast %cst_50 : f32 to vector<8x128xf32>
    %132 = arith.mulf %131, %130 : vector<8x128xf32>
    %133 = math.tanh %132 : vector<8x128xf32>
    %cst_51 = arith.constant 5.000000e-01 : f32
    %134 = vector.broadcast %cst_51 : f32 to vector<8x128xf32>
    %135 = arith.mulf %134, %133 : vector<8x128xf32>
    %cst_52 = arith.constant 5.000000e-01 : f32
    %136 = vector.broadcast %cst_52 : f32 to vector<8x128xf32>
    %137 = arith.addf %135, %136 : vector<8x128xf32>
    %138 = arith.mulf %127, %105 : vector<8x128xf32>
    %139 = arith.mulf %119, %129 : vector<8x128xf32>
    %140 = arith.addf %138, %139 : vector<8x128xf32>
    %141 = math.tanh %140 : vector<8x128xf32>
    %142 = arith.mulf %137, %141 : vector<8x128xf32>
    %c4 = arith.constant 4 : index
    %c0_53 = arith.constant 0 : index
    %c0_54 = arith.constant 0 : index
    %143 = vector.load %arg0[%c4, %c0_53, %c0_54] : memref<8x8x512xf32, #tpu.memory_space<vmem>>, vector<1x8x512xf32>
    %144 = vector.shape_cast %143 : vector<1x8x512xf32> to vector<8x512xf32>
    %cst_55 = arith.constant dense<0.000000e+00> : vector<8x512xf32>
    %145 = tpu.matmul %142, %2, %cst_55 {dimension_numbers = #tpu.dot_dimension_numbers<[1], [0], [0], [1], [0, 0, 1, 1], [], []>} : vector<8x128xf32>, vector<128x512xf32>, vector<8x512xf32> -> vector<8x512xf32>
    %146 = arith.addf %144, %145 : vector<8x512xf32>
    %147 = vector.extract_strided_slice %146 {offsets = [0, 0], sizes = [8, 128], strides = [1, 1]} : vector<8x512xf32> to vector<8x128xf32>
    %cst_56 = arith.constant 5.000000e-01 : f32
    %148 = vector.broadcast %cst_56 : f32 to vector<8x128xf32>
    %149 = arith.mulf %148, %147 : vector<8x128xf32>
    %150 = math.tanh %149 : vector<8x128xf32>
    %cst_57 = arith.constant 5.000000e-01 : f32
    %151 = vector.broadcast %cst_57 : f32 to vector<8x128xf32>
    %152 = arith.mulf %151, %150 : vector<8x128xf32>
    %cst_58 = arith.constant 5.000000e-01 : f32
    %153 = vector.broadcast %cst_58 : f32 to vector<8x128xf32>
    %154 = arith.addf %152, %153 : vector<8x128xf32>
    %155 = vector.extract_strided_slice %146 {offsets = [0, 128], sizes = [8, 128], strides = [1, 1]} : vector<8x512xf32> to vector<8x128xf32>
    %cst_59 = arith.constant 5.000000e-01 : f32
    %156 = vector.broadcast %cst_59 : f32 to vector<8x128xf32>
    %157 = arith.mulf %156, %155 : vector<8x128xf32>
    %158 = math.tanh %157 : vector<8x128xf32>
    %cst_60 = arith.constant 5.000000e-01 : f32
    %159 = vector.broadcast %cst_60 : f32 to vector<8x128xf32>
    %160 = arith.mulf %159, %158 : vector<8x128xf32>
    %cst_61 = arith.constant 5.000000e-01 : f32
    %161 = vector.broadcast %cst_61 : f32 to vector<8x128xf32>
    %162 = arith.addf %160, %161 : vector<8x128xf32>
    %163 = vector.extract_strided_slice %146 {offsets = [0, 256], sizes = [8, 128], strides = [1, 1]} : vector<8x512xf32> to vector<8x128xf32>
    %164 = math.tanh %163 : vector<8x128xf32>
    %165 = vector.extract_strided_slice %146 {offsets = [0, 384], sizes = [8, 128], strides = [1, 1]} : vector<8x512xf32> to vector<8x128xf32>
    %cst_62 = arith.constant 5.000000e-01 : f32
    %166 = vector.broadcast %cst_62 : f32 to vector<8x128xf32>
    %167 = arith.mulf %166, %165 : vector<8x128xf32>
    %168 = math.tanh %167 : vector<8x128xf32>
    %cst_63 = arith.constant 5.000000e-01 : f32
    %169 = vector.broadcast %cst_63 : f32 to vector<8x128xf32>
    %170 = arith.mulf %169, %168 : vector<8x128xf32>
    %cst_64 = arith.constant 5.000000e-01 : f32
    %171 = vector.broadcast %cst_64 : f32 to vector<8x128xf32>
    %172 = arith.addf %170, %171 : vector<8x128xf32>
    %173 = arith.mulf %162, %140 : vector<8x128xf32>
    %174 = arith.mulf %154, %164 : vector<8x128xf32>
    %175 = arith.addf %173, %174 : vector<8x128xf32>
    %176 = math.tanh %175 : vector<8x128xf32>
    %177 = arith.mulf %172, %176 : vector<8x128xf32>
    %c5 = arith.constant 5 : index
    %c0_65 = arith.constant 0 : index
    %c0_66 = arith.constant 0 : index
    %178 = vector.load %arg0[%c5, %c0_65, %c0_66] : memref<8x8x512xf32, #tpu.memory_space<vmem>>, vector<1x8x512xf32>
    %179 = vector.shape_cast %178 : vector<1x8x512xf32> to vector<8x512xf32>
    %cst_67 = arith.constant dense<0.000000e+00> : vector<8x512xf32>
    %180 = tpu.matmul %177, %2, %cst_67 {dimension_numbers = #tpu.dot_dimension_numbers<[1], [0], [0], [1], [0, 0, 1, 1], [], []>} : vector<8x128xf32>, vector<128x512xf32>, vector<8x512xf32> -> vector<8x512xf32>
    %181 = arith.addf %179, %180 : vector<8x512xf32>
    %182 = vector.extract_strided_slice %181 {offsets = [0, 0], sizes = [8, 128], strides = [1, 1]} : vector<8x512xf32> to vector<8x128xf32>
    %cst_68 = arith.constant 5.000000e-01 : f32
    %183 = vector.broadcast %cst_68 : f32 to vector<8x128xf32>
    %184 = arith.mulf %183, %182 : vector<8x128xf32>
    %185 = math.tanh %184 : vector<8x128xf32>
    %cst_69 = arith.constant 5.000000e-01 : f32
    %186 = vector.broadcast %cst_69 : f32 to vector<8x128xf32>
    %187 = arith.mulf %186, %185 : vector<8x128xf32>
    %cst_70 = arith.constant 5.000000e-01 : f32
    %188 = vector.broadcast %cst_70 : f32 to vector<8x128xf32>
    %189 = arith.addf %187, %188 : vector<8x128xf32>
    %190 = vector.extract_strided_slice %181 {offsets = [0, 128], sizes = [8, 128], strides = [1, 1]} : vector<8x512xf32> to vector<8x128xf32>
    %cst_71 = arith.constant 5.000000e-01 : f32
    %191 = vector.broadcast %cst_71 : f32 to vector<8x128xf32>
    %192 = arith.mulf %191, %190 : vector<8x128xf32>
    %193 = math.tanh %192 : vector<8x128xf32>
    %cst_72 = arith.constant 5.000000e-01 : f32
    %194 = vector.broadcast %cst_72 : f32 to vector<8x128xf32>
    %195 = arith.mulf %194, %193 : vector<8x128xf32>
    %cst_73 = arith.constant 5.000000e-01 : f32
    %196 = vector.broadcast %cst_73 : f32 to vector<8x128xf32>
    %197 = arith.addf %195, %196 : vector<8x128xf32>
    %198 = vector.extract_strided_slice %181 {offsets = [0, 256], sizes = [8, 128], strides = [1, 1]} : vector<8x512xf32> to vector<8x128xf32>
    %199 = math.tanh %198 : vector<8x128xf32>
    %200 = vector.extract_strided_slice %181 {offsets = [0, 384], sizes = [8, 128], strides = [1, 1]} : vector<8x512xf32> to vector<8x128xf32>
    %cst_74 = arith.constant 5.000000e-01 : f32
    %201 = vector.broadcast %cst_74 : f32 to vector<8x128xf32>
    %202 = arith.mulf %201, %200 : vector<8x128xf32>
    %203 = math.tanh %202 : vector<8x128xf32>
    %cst_75 = arith.constant 5.000000e-01 : f32
    %204 = vector.broadcast %cst_75 : f32 to vector<8x128xf32>
    %205 = arith.mulf %204, %203 : vector<8x128xf32>
    %cst_76 = arith.constant 5.000000e-01 : f32
    %206 = vector.broadcast %cst_76 : f32 to vector<8x128xf32>
    %207 = arith.addf %205, %206 : vector<8x128xf32>
    %208 = arith.mulf %197, %175 : vector<8x128xf32>
    %209 = arith.mulf %189, %199 : vector<8x128xf32>
    %210 = arith.addf %208, %209 : vector<8x128xf32>
    %211 = math.tanh %210 : vector<8x128xf32>
    %212 = arith.mulf %207, %211 : vector<8x128xf32>
    %c6 = arith.constant 6 : index
    %c0_77 = arith.constant 0 : index
    %c0_78 = arith.constant 0 : index
    %213 = vector.load %arg0[%c6, %c0_77, %c0_78] : memref<8x8x512xf32, #tpu.memory_space<vmem>>, vector<1x8x512xf32>
    %214 = vector.shape_cast %213 : vector<1x8x512xf32> to vector<8x512xf32>
    %cst_79 = arith.constant dense<0.000000e+00> : vector<8x512xf32>
    %215 = tpu.matmul %212, %2, %cst_79 {dimension_numbers = #tpu.dot_dimension_numbers<[1], [0], [0], [1], [0, 0, 1, 1], [], []>} : vector<8x128xf32>, vector<128x512xf32>, vector<8x512xf32> -> vector<8x512xf32>
    %216 = arith.addf %214, %215 : vector<8x512xf32>
    %217 = vector.extract_strided_slice %216 {offsets = [0, 0], sizes = [8, 128], strides = [1, 1]} : vector<8x512xf32> to vector<8x128xf32>
    %cst_80 = arith.constant 5.000000e-01 : f32
    %218 = vector.broadcast %cst_80 : f32 to vector<8x128xf32>
    %219 = arith.mulf %218, %217 : vector<8x128xf32>
    %220 = math.tanh %219 : vector<8x128xf32>
    %cst_81 = arith.constant 5.000000e-01 : f32
    %221 = vector.broadcast %cst_81 : f32 to vector<8x128xf32>
    %222 = arith.mulf %221, %220 : vector<8x128xf32>
    %cst_82 = arith.constant 5.000000e-01 : f32
    %223 = vector.broadcast %cst_82 : f32 to vector<8x128xf32>
    %224 = arith.addf %222, %223 : vector<8x128xf32>
    %225 = vector.extract_strided_slice %216 {offsets = [0, 128], sizes = [8, 128], strides = [1, 1]} : vector<8x512xf32> to vector<8x128xf32>
    %cst_83 = arith.constant 5.000000e-01 : f32
    %226 = vector.broadcast %cst_83 : f32 to vector<8x128xf32>
    %227 = arith.mulf %226, %225 : vector<8x128xf32>
    %228 = math.tanh %227 : vector<8x128xf32>
    %cst_84 = arith.constant 5.000000e-01 : f32
    %229 = vector.broadcast %cst_84 : f32 to vector<8x128xf32>
    %230 = arith.mulf %229, %228 : vector<8x128xf32>
    %cst_85 = arith.constant 5.000000e-01 : f32
    %231 = vector.broadcast %cst_85 : f32 to vector<8x128xf32>
    %232 = arith.addf %230, %231 : vector<8x128xf32>
    %233 = vector.extract_strided_slice %216 {offsets = [0, 256], sizes = [8, 128], strides = [1, 1]} : vector<8x512xf32> to vector<8x128xf32>
    %234 = math.tanh %233 : vector<8x128xf32>
    %235 = vector.extract_strided_slice %216 {offsets = [0, 384], sizes = [8, 128], strides = [1, 1]} : vector<8x512xf32> to vector<8x128xf32>
    %cst_86 = arith.constant 5.000000e-01 : f32
    %236 = vector.broadcast %cst_86 : f32 to vector<8x128xf32>
    %237 = arith.mulf %236, %235 : vector<8x128xf32>
    %238 = math.tanh %237 : vector<8x128xf32>
    %cst_87 = arith.constant 5.000000e-01 : f32
    %239 = vector.broadcast %cst_87 : f32 to vector<8x128xf32>
    %240 = arith.mulf %239, %238 : vector<8x128xf32>
    %cst_88 = arith.constant 5.000000e-01 : f32
    %241 = vector.broadcast %cst_88 : f32 to vector<8x128xf32>
    %242 = arith.addf %240, %241 : vector<8x128xf32>
    %243 = arith.mulf %232, %210 : vector<8x128xf32>
    %244 = arith.mulf %224, %234 : vector<8x128xf32>
    %245 = arith.addf %243, %244 : vector<8x128xf32>
    %246 = math.tanh %245 : vector<8x128xf32>
    %247 = arith.mulf %242, %246 : vector<8x128xf32>
    %c7 = arith.constant 7 : index
    %c0_89 = arith.constant 0 : index
    %c0_90 = arith.constant 0 : index
    %248 = vector.load %arg0[%c7, %c0_89, %c0_90] : memref<8x8x512xf32, #tpu.memory_space<vmem>>, vector<1x8x512xf32>
    %249 = vector.shape_cast %248 : vector<1x8x512xf32> to vector<8x512xf32>
    %cst_91 = arith.constant dense<0.000000e+00> : vector<8x512xf32>
    %250 = tpu.matmul %247, %2, %cst_91 {dimension_numbers = #tpu.dot_dimension_numbers<[1], [0], [0], [1], [0, 0, 1, 1], [], []>} : vector<8x128xf32>, vector<128x512xf32>, vector<8x512xf32> -> vector<8x512xf32>
    %251 = arith.addf %249, %250 : vector<8x512xf32>
    %252 = vector.extract_strided_slice %251 {offsets = [0, 0], sizes = [8, 128], strides = [1, 1]} : vector<8x512xf32> to vector<8x128xf32>
    %cst_92 = arith.constant 5.000000e-01 : f32
    %253 = vector.broadcast %cst_92 : f32 to vector<8x128xf32>
    %254 = arith.mulf %253, %252 : vector<8x128xf32>
    %255 = math.tanh %254 : vector<8x128xf32>
    %cst_93 = arith.constant 5.000000e-01 : f32
    %256 = vector.broadcast %cst_93 : f32 to vector<8x128xf32>
    %257 = arith.mulf %256, %255 : vector<8x128xf32>
    %cst_94 = arith.constant 5.000000e-01 : f32
    %258 = vector.broadcast %cst_94 : f32 to vector<8x128xf32>
    %259 = arith.addf %257, %258 : vector<8x128xf32>
    %260 = vector.extract_strided_slice %251 {offsets = [0, 128], sizes = [8, 128], strides = [1, 1]} : vector<8x512xf32> to vector<8x128xf32>
    %cst_95 = arith.constant 5.000000e-01 : f32
    %261 = vector.broadcast %cst_95 : f32 to vector<8x128xf32>
    %262 = arith.mulf %261, %260 : vector<8x128xf32>
    %263 = math.tanh %262 : vector<8x128xf32>
    %cst_96 = arith.constant 5.000000e-01 : f32
    %264 = vector.broadcast %cst_96 : f32 to vector<8x128xf32>
    %265 = arith.mulf %264, %263 : vector<8x128xf32>
    %cst_97 = arith.constant 5.000000e-01 : f32
    %266 = vector.broadcast %cst_97 : f32 to vector<8x128xf32>
    %267 = arith.addf %265, %266 : vector<8x128xf32>
    %268 = vector.extract_strided_slice %251 {offsets = [0, 256], sizes = [8, 128], strides = [1, 1]} : vector<8x512xf32> to vector<8x128xf32>
    %269 = math.tanh %268 : vector<8x128xf32>
    %270 = vector.extract_strided_slice %251 {offsets = [0, 384], sizes = [8, 128], strides = [1, 1]} : vector<8x512xf32> to vector<8x128xf32>
    %cst_98 = arith.constant 5.000000e-01 : f32
    %271 = vector.broadcast %cst_98 : f32 to vector<8x128xf32>
    %272 = arith.mulf %271, %270 : vector<8x128xf32>
    %273 = math.tanh %272 : vector<8x128xf32>
    %cst_99 = arith.constant 5.000000e-01 : f32
    %274 = vector.broadcast %cst_99 : f32 to vector<8x128xf32>
    %275 = arith.mulf %274, %273 : vector<8x128xf32>
    %cst_100 = arith.constant 5.000000e-01 : f32
    %276 = vector.broadcast %cst_100 : f32 to vector<8x128xf32>
    %277 = arith.addf %275, %276 : vector<8x128xf32>
    %278 = arith.mulf %267, %245 : vector<8x128xf32>
    %279 = arith.mulf %259, %269 : vector<8x128xf32>
    %280 = arith.addf %278, %279 : vector<8x128xf32>
    %281 = math.tanh %280 : vector<8x128xf32>
    %282 = arith.mulf %277, %281 : vector<8x128xf32>
    %c0_101 = arith.constant 0 : index
    %c0_102 = arith.constant 0 : index
    %283 = vector.load %arg7[%c0_101, %c0_102] : memref<8x128xf32, #tpu.memory_space<vmem>>, vector<8x128xf32>
    tpu.vector_store %arg7[%c0_101, %c0_102], %282 {strides = array<i32>} : memref<8x128xf32, #tpu.memory_space<vmem>>, vector<8x128xf32>,
    %c0_103 = arith.constant 0 : index
    %c0_104 = arith.constant 0 : index
    %284 = vector.load %arg8[%c0_103, %c0_104] : memref<8x128xf32, #tpu.memory_space<vmem>>, vector<8x128xf32>
    tpu.vector_store %arg8[%c0_103, %c0_104], %280 {strides = array<i32>} : memref<8x128xf32, #tpu.memory_space<vmem>>, vector<8x128xf32>,
    %285 = tpu.concatenate %37, %72, %107, %142, %177, %212, %247, %282 in 0 : vector<8x128xf32>, vector<8x128xf32>, vector<8x128xf32>, vector<8x128xf32>, vector<8x128xf32>, vector<8x128xf32>, vector<8x128xf32>, vector<8x128xf32> -> vector<64x128xf32>
    %c0_105 = arith.constant 0 : index
    %c0_106 = arith.constant 0 : index
    %286 = vector.load %arg4[%c0_105, %c0_106] : memref<128x128xf32, #tpu.memory_space<vmem>>, vector<128x128xf32>
    %cst_107 = arith.constant dense<0.000000e+00> : vector<64x128xf32>
    %287 = tpu.matmul %285, %286, %cst_107 {dimension_numbers = #tpu.dot_dimension_numbers<[1], [0], [0], [1], [0, 0, 1, 1], [], []>} : vector<64x128xf32>, vector<128x128xf32>, vector<64x128xf32> -> vector<64x128xf32>
    %c0_108 = arith.constant 0 : index
    %c0_109 = arith.constant 0 : index
    %288 = vector.load %arg5[%c0_108, %c0_109] : memref<1x128xf32, #tpu.memory_space<vmem>>, vector<1x128xf32>
    %289 = vector.broadcast %288 : vector<1x128xf32> to vector<64x128xf32>
    %290 = arith.addf %287, %289 : vector<64x128xf32>
    %c0_110 = arith.constant 0 : index
    %c0_111 = arith.constant 0 : index
    %291 = vector.load %arg6[%c0_110, %c0_111] : memref<64x128xf32, #tpu.memory_space<vmem>>, vector<64x128xf32>
    tpu.vector_store %arg6[%c0_110, %c0_111], %290 {strides = array<i32>} : memref<64x128xf32, #tpu.memory_space<vmem>>, vector<64x128xf32>,
    return
  }
}

</mosaic_0001>

<llo_original>
// kernel: tpu_custom_call.1
$region0: #{tpu_custom_call.1}
  #allocation0 [shape = 'u32[]', space=smem, size = 0x4, offset = 0x4, fixed_abs, tag = 'smem constant byte address 0x4 - core index']
  #allocation1 [shape = 'u32[72,128]{1,0:T(1,128)}', space=vmem, size = 0x9000, scoped, tag = 'internal scratch']
  %s0 = inlined_call_operand.hbm [shape: f32[8,8,512], index: 0, kind: input, shape index: {}]
  %s1 = inlined_call_operand.hbm [shape: f32[8,128], index: 1, kind: input, shape index: {}]
  %s2 = inlined_call_operand.hbm [shape: f32[8,128], index: 2, kind: input, shape index: {}]
  %s3 = inlined_call_operand.hbm [shape: f32[128,512], index: 3, kind: input, shape index: {}]
  %s4 = inlined_call_operand.hbm [shape: f32[128,128], index: 4, kind: input, shape index: {}]
  %s5 = inlined_call_operand.vmem [shape: f32[1,128], index: 5, kind: input, shape index: {}]
  %s6 = inlined_call_operand.hbm [shape: f32[64,128], index: 6, kind: output, shape index: {0}]
  %s7 = inlined_call_operand.hbm [shape: f32[8,128], index: 7, kind: output, shape index: {1}]
  %s8 = inlined_call_operand.hbm [shape: f32[8,128], index: 8, kind: output, shape index: {2}]
  %9 = xla_tuple %s6, %s7, %s8
  %s10 = sld [smem:[#allocation0]]
  $region70: #{tpu_custom_call.1} parent=0
    _
  %s12 = ssub.s32 1, %s10
  %s13 = scalar_select 0, %s12, %s10
  $region1: #{tpu_custom_call.1} parent=0
    #allocation2 [shape = 'u8[131072]{0}', space=vmem, size = 0x20000, scoped, tag = 'input window, operand 0, single buffered']
    #allocation3 [shape = 's32[1]{0}', space=sflag, size = 0x4, scoped, tag = 'scoped memory for tpu_custom_call.1']
    #allocation4 [shape = 's32[1]{0}', space=sflag, size = 0x4, scoped, tag = 'scoped memory for tpu_custom_call.1']
    #allocation5 [shape = 'u8[4096]{0}', space=vmem, size = 0x1000, scoped, tag = 'input window, operand 1, single buffered']
    #allocation6 [shape = 's32[1]{0}', space=sflag, size = 0x4, scoped, tag = 'scoped memory for tpu_custom_call.1']
    #allocation7 [shape = 'u8[4096]{0}', space=vmem, size = 0x1000, scoped, tag = 'input window, operand 2, single buffered']
    #allocation8 [shape = 'u8[262144]{0}', space=vmem, size = 0x40000, scoped, tag = 'input window, operand 3, single buffered']
    #allocation9 [shape = 's32[1]{0}', space=sflag, size = 0x4, scoped, tag = 'scoped memory for tpu_custom_call.1']
    #allocation10 [shape = 'u8[65536]{0}', space=vmem, size = 0x10000, scoped, tag = 'input window, operand 4, single buffered']
    #allocation11 [shape = 'u8[32768]{0}', space=vmem, size = 0x8000, scoped, tag = 'output window, operand 0, single buffered']
    #allocation12 [shape = 'u8[4096]{0}', space=vmem, size = 0x1000, scoped, tag = 'output window, operand 1, single buffered']
    #allocation13 [shape = 's32[1]{0}', space=sflag, size = 0x4, scoped, tag = 'scoped memory for tpu_custom_call.1']
    #allocation14 [shape = 'u8[4096]{0}', space=vmem, size = 0x1000, scoped, tag = 'output window, operand 2, single buffered']
    %14 = vsyncpa [#allocation3], 0
    %15 = vsyncpa [#allocation6], 0
    %16 = vsyncpa [#allocation9], 0
    %17 = vsyncpa [#allocation4], 0
    %18 = vsyncpa [#allocation13], 0
    // Predicated region
    $region2: #{tpu_custom_call.1} parent=1 // pred_check
      _
    $region3: #{tpu_custom_call.1} parent=1 // pred_check_branch
      %20 = sbr.rel (0) target = $region5
    $region4: #{tpu_custom_call.1} parent=1 // pred_region
      %22 = vsyncadd [#allocation3], 0
      %s23 = sshll.u32 %s0, 4
      %s24 = int_to_ptr.hbm [resolvable:$true] %s23
      %s25 = sshll.u32 [#allocation2], 4
      %s26 = int_to_ptr.vmem [resolvable:$true] %s25
      %31 = dma.hbm_to_vmem [thread:$0]  %s24, 4096, %s26, [#allocation3], 512, 512, 32
    $region5: #{tpu_custom_call.1} parent=1 // pred_fallthru
      _
    // Predicated region
    $region6: #{tpu_custom_call.1} parent=1 // pred_check
      _
    $region7: #{tpu_custom_call.1} parent=1 // pred_check_branch
      %33 = sbr.rel (0) target = $region9
    $region8: #{tpu_custom_call.1} parent=1 // pred_region
      %35 = vsyncadd [#allocation6], 0
      %s37 = sshll.u32 %s1, 4
      %s38 = int_to_ptr.hbm [resolvable:$true] %s37
      %s39 = sshll.u32 [#allocation5], 4
      %s40 = int_to_ptr.vmem [resolvable:$true] %s39
      %42 = dma.hbm_to_vmem [thread:$0]  %s38, 128, %s40, [#allocation6]
    $region9: #{tpu_custom_call.1} parent=1 // pred_fallthru
      _
    // Predicated region
    $region10: #{tpu_custom_call.1} parent=1 // pred_check
      _
    $region11: #{tpu_custom_call.1} parent=1 // pred_check_branch
      %44 = sbr.rel (0) target = $region13
    $region12: #{tpu_custom_call.1} parent=1 // pred_region
      %46 = vsyncadd [#allocation6], 0
      %s48 = sshll.u32 %s2, 4
      %s49 = int_to_ptr.hbm [resolvable:$true] %s48
      %s50 = sshll.u32 [#allocation7], 4
      %s51 = int_to_ptr.vmem [resolvable:$true] %s50
      %53 = dma.hbm_to_vmem [thread:$0]  %s49, 128, %s51, [#allocation6]
    $region13: #{tpu_custom_call.1} parent=1 // pred_fallthru
      _
    // Predicated region
    $region14: #{tpu_custom_call.1} parent=1 // pred_check
      _
    $region15: #{tpu_custom_call.1} parent=1 // pred_check_branch
      %55 = sbr.rel (0) target = $region17
    $region16: #{tpu_custom_call.1} parent=1 // pred_region
      %57 = vsyncadd [#allocation9], 0
      %s58 = sshll.u32 %s3, 4
      %s59 = int_to_ptr.hbm [resolvable:$true] %s58
      %s60 = sshll.u32 [#allocation8], 4
      %s61 = int_to_ptr.vmem [resolvable:$true] %s60
      %66 = dma.hbm_to_vmem [thread:$0]  %s59, 8192, %s61, [#allocation9], 512, 512, 32
    $region17: #{tpu_custom_call.1} parent=1 // pred_fallthru
      _
    // Predicated region
    $region18: #{tpu_custom_call.1} parent=1 // pred_check
      _
    $region19: #{tpu_custom_call.1} parent=1 // pred_check_branch
      %68 = sbr.rel (0) target = $region21
    $region20: #{tpu_custom_call.1} parent=1 // pred_region
      %70 = vsyncadd [#allocation9], 0
      %s71 = sshll.u32 %s4, 4
      %s72 = int_to_ptr.hbm [resolvable:$true] %s71
      %s73 = sshll.u32 [#allocation10], 4
      %s74 = int_to_ptr.vmem [resolvable:$true] %s73
      %79 = dma.hbm_to_vmem [thread:$0]  %s72, 2048, %s74, [#allocation9], 128, 128, 8
    $region21: #{tpu_custom_call.1} parent=1 // pred_fallthru
      _
    // Predicated region
    $region22: #{tpu_custom_call.1} parent=1 // pred_check
      _
    $region23: #{tpu_custom_call.1} parent=1 // pred_check_branch
      %81 = sbr.rel (0) target = $region25
    $region24: #{tpu_custom_call.1} parent=1 // pred_region
      _
    $region25: #{tpu_custom_call.1} parent=1 // pred_fallthru
      _
    // Predicated region
    $region26: #{tpu_custom_call.1} parent=1 // pred_check
      _
    $region27: #{tpu_custom_call.1} parent=1 // pred_check_branch
      %83 = sbr.rel (0) target = $region29
    $region28: #{tpu_custom_call.1} parent=1 // pred_region
      %85 = dma.done [#allocation3], 4096
    $region29: #{tpu_custom_call.1} parent=1 // pred_fallthru
      _
    // Predicated region
    $region30: #{tpu_custom_call.1} parent=1 // pred_check
      _
    $region31: #{tpu_custom_call.1} parent=1 // pred_check_branch
      %87 = sbr.rel (0) target = $region33
    $region32: #{tpu_custom_call.1} parent=1 // pred_region
      %89 = dma.done [#allocation6], 128
    $region33: #{tpu_custom_call.1} parent=1 // pred_fallthru
      _
    // Predicated region
    $region34: #{tpu_custom_call.1} parent=1 // pred_check
      _
    $region35: #{tpu_custom_call.1} parent=1 // pred_check_branch
      %91 = sbr.rel (0) target = $region37
    $region36: #{tpu_custom_call.1} parent=1 // pred_region
      %93 = dma.done [#allocation6], 128
    $region37: #{tpu_custom_call.1} parent=1 // pred_fallthru
      _
    // Predicated region
    $region38: #{tpu_custom_call.1} parent=1 // pred_check
      _
    $region39: #{tpu_custom_call.1} parent=1 // pred_check_branch
      %95 = sbr.rel (0) target = $region41
    $region40: #{tpu_custom_call.1} parent=1 // pred_region
      %97 = dma.done [#allocation9], 8192
    $region41: #{tpu_custom_call.1} parent=1 // pred_fallthru
      _
    // Predicated region
    $region42: #{tpu_custom_call.1} parent=1 // pred_check
      _
    $region43: #{tpu_custom_call.1} parent=1 // pred_check_branch
      %99 = sbr.rel (0) target = $region45
    $region44: #{tpu_custom_call.1} parent=1 // pred_region
      %101 = dma.done [#allocation9], 2048
    $region45: #{tpu_custom_call.1} parent=1 // pred_fallthru
      _
    %v102 = vld [vmem:[#allocation5] sm:$0xff]
    %v103 = vld [vmem:[#allocation7] sm:$0xff]
    %v104 = vld [vmem:[#allocation8] sm:$0xff]
    %v105 = vld [vmem:[#allocation8 + $0x8] sm:$0xff]
    %v106 = vld [vmem:[#allocation8 + $0x10] sm:$0xff]
    %v107 = vld [vmem:[#allocation8 + $0x18] sm:$0xff]
    %v108 = vld [vmem:[#allocation8 + $0x20] sm:$0xff]
    %v109 = vld [vmem:[#allocation8 + $0x28] sm:$0xff]
    %v110 = vld [vmem:[#allocation8 + $0x30] sm:$0xff]
    %v111 = vld [vmem:[#allocation8 + $0x38] sm:$0xff]
    %v112 = vld [vmem:[#allocation8 + $0x40] sm:$0xff]
    %v113 = vld [vmem:[#allocation8 + $0x48] sm:$0xff]
    %v114 = vld [vmem:[#allocation8 + $0x50] sm:$0xff]
    %v115 = vld [vmem:[#allocation8 + $0x58] sm:$0xff]
    %v116 = vld [vmem:[#allocation8 + $0x60] sm:$0xff]
    %v117 = vld [vmem:[#allocation8 + $0x68] sm:$0xff]
    %v118 = vld [vmem:[#allocation8 + $0x70] sm:$0xff]
    %v119 = vld [vmem:[#allocation8 + $0x78] sm:$0xff]
    %v120 = vld [vmem:[#allocation8 + $0x80] sm:$0xff]
    %v121 = vld [vmem:[#allocation8 + $0x88] sm:$0xff]
    %v122 = vld [vmem:[#allocation8 + $0x90] sm:$0xff]
    %v123 = vld [vmem:[#allocation8 + $0x98] sm:$0xff]
    %v124 = vld [vmem:[#allocation8 + $0xa0] sm:$0xff]
    %v125 = vld [vmem:[#allocation8 + $0xa8] sm:$0xff]
    %v126 = vld [vmem:[#allocation8 + $0xb0] sm:$0xff]
    %v127 = vld [vmem:[#allocation8 + $0xb8] sm:$0xff]
    %v128 = vld [vmem:[#allocation8 + $0xc0] sm:$0xff]
    %v129 = vld [vmem:[#allocation8 + $0xc8] sm:$0xff]
    %v130 = vld [vmem:[#allocation8 + $0xd0] sm:$0xff]
    %v131 = vld [vmem:[#allocation8 + $0xd8] sm:$0xff]
    %v132 = vld [vmem:[#allocation8 + $0xe0] sm:$0xff]
    %v133 = vld [vmem:[#allocation8 + $0xe8] sm:$0xff]
    %v134 = vld [vmem:[#allocation8 + $0xf0] sm:$0xff]
    %v135 = vld [vmem:[#allocation8 + $0xf8] sm:$0xff]
    %v136 = vld [vmem:[#allocation8 + $0x100] sm:$0xff]
    %v137 = vld [vmem:[#allocation8 + $0x108] sm:$0xff]
    %v138 = vld [vmem:[#allocation8 + $0x110] sm:$0xff]
    %v139 = vld [vmem:[#allocation8 + $0x118] sm:$0xff]
    %v140 = vld [vmem:[#allocation8 + $0x120] sm:$0xff]
    %v141 = vld [vmem:[#allocation8 + $0x128] sm:$0xff]
    %v142 = vld [vmem:[#allocation8 + $0x130] sm:$0xff]
    %v143 = vld [vmem:[#allocation8 + $0x138] sm:$0xff]
    %v144 = vld [vmem:[#allocation8 + $0x140] sm:$0xff]
    %v145 = vld [vmem:[#allocation8 + $0x148] sm:$0xff]
    %v146 = vld [vmem:[#allocation8 + $0x150] sm:$0xff]
    %v147 = vld [vmem:[#allocation8 + $0x158] sm:$0xff]
    %v148 = vld [vmem:[#allocation8 + $0x160] sm:$0xff]
    %v149 = vld [vmem:[#allocation8 + $0x168] sm:$0xff]
    %v150 = vld [vmem:[#allocation8 + $0x170] sm:$0xff]
    %v151 = vld [vmem:[#allocation8 + $0x178] sm:$0xff]
    %v152 = vld [vmem:[#allocation8 + $0x180] sm:$0xff]
    %v153 = vld [vmem:[#allocation8 + $0x188] sm:$0xff]
    %v154 = vld [vmem:[#allocation8 + $0x190] sm:$0xff]
    %v155 = vld [vmem:[#allocation8 + $0x198] sm:$0xff]
    %v156 = vld [vmem:[#allocation8 + $0x1a0] sm:$0xff]
    %v157 = vld [vmem:[#allocation8 + $0x1a8] sm:$0xff]
    %v158 = vld [vmem:[#allocation8 + $0x1b0] sm:$0xff]
    %v159 = vld [vmem:[#allocation8 + $0x1b8] sm:$0xff]
    %v160 = vld [vmem:[#allocation8 + $0x1c0] sm:$0xff]
    %v161 = vld [vmem:[#allocation8 + $0x1c8] sm:$0xff]
    %v162 = vld [vmem:[#allocation8 + $0x1d0] sm:$0xff]
    %v163 = vld [vmem:[#allocation8 + $0x1d8] sm:$0xff]
    %v164 = vld [vmem:[#allocation8 + $0x1e0] sm:$0xff]
    %v165 = vld [vmem:[#allocation8 + $0x1e8] sm:$0xff]
    %v166 = vld [vmem:[#allocation8 + $0x1f0] sm:$0xff]
    %v167 = vld [vmem:[#allocation8 + $0x1f8] sm:$0xff]
    %v168 = vld [vmem:[#allocation2] sm:$0xff]
    %v169 = vld [vmem:[#allocation2 + $0x8] sm:$0xff]
    %v170 = vld [vmem:[#allocation2 + $0x10] sm:$0xff]
    %v171 = vld [vmem:[#allocation2 + $0x18] sm:$0xff]
    %172 = vmatpush.msra.mxu0 %v164
    %173 = vmatpush.msra.mxu0 %v160
    %174 = vmatpush.msra.mxu0 %v156
    %175 = vmatpush.msra.mxu0 %v152
    %176 = vmatpush.msra.mxu0 %v148
    %177 = vmatpush.msra.mxu0 %v144
    %178 = vmatpush.msra.mxu0 %v140
    %179 = vmatpush.msra.mxu0 %v136
    %180 = vmatpush.msra.mxu0 %v132
    %181 = vmatpush.msra.mxu0 %v128
    %182 = vmatpush.msra.mxu0 %v124
    %183 = vmatpush.msra.mxu0 %v120
    %184 = vmatpush.msra.mxu0 %v116
    %185 = vmatpush.msra.mxu0 %v112
    %186 = vmatpush.msra.mxu0 %v108
    %187 = vmatpush.msra.mxu0 %v104
    %188 = vmatmul.f32.gmra.mxu0 %v102
    %v189 = vpop.f32.mrf.mxu0
    %v190 = vadd.f32 0.0, %v189
    %191 = vdwg.mxu0
    %192 = vmatpush.msra.mxu0 %v165
    %193 = vmatpush.msra.mxu0 %v161
    %194 = vmatpush.msra.mxu0 %v157
    %195 = vmatpush.msra.mxu0 %v153
    %196 = vmatpush.msra.mxu0 %v149
    %197 = vmatpush.msra.mxu0 %v145
    %198 = vmatpush.msra.mxu0 %v141
    %199 = vmatpush.msra.mxu0 %v137
    %200 = vmatpush.msra.mxu0 %v133
    %201 = vmatpush.msra.mxu0 %v129
    %202 = vmatpush.msra.mxu0 %v125
    %203 = vmatpush.msra.mxu0 %v121
    %204 = vmatpush.msra.mxu0 %v117
    %205 = vmatpush.msra.mxu0 %v113
    %206 = vmatpush.msra.mxu0 %v109
    %207 = vmatpush.msra.mxu0 %v105
    %208 = vmatmul.f32.gmra.mxu0 %v102
    %v209 = vpop.f32.mrf.mxu0
    %v210 = vadd.f32 0.0, %v209
    %211 = vdwg.mxu0
    %212 = vmatpush.msra.mxu0 %v166
    %213 = vmatpush.msra.mxu0 %v162
    %214 = vmatpush.msra.mxu0 %v158
    %215 = vmatpush.msra.mxu0 %v154
    %216 = vmatpush.msra.mxu0 %v150
    %217 = vmatpush.msra.mxu0 %v146
    %218 = vmatpush.msra.mxu0 %v142
    %219 = vmatpush.msra.mxu0 %v138
    %220 = vmatpush.msra.mxu0 %v134
    %221 = vmatpush.msra.mxu0 %v130
    %222 = vmatpush.msra.mxu0 %v126
    %223 = vmatpush.msra.mxu0 %v122
    %224 = vmatpush.msra.mxu0 %v118
    %225 = vmatpush.msra.mxu0 %v114
    %226 = vmatpush.msra.mxu0 %v110
    %227 = vmatpush.msra.mxu0 %v106
    %228 = vmatmul.f32.gmra.mxu0 %v102
    %v229 = vpop.f32.mrf.mxu0
    %v230 = vadd.f32 0.0, %v229
    %231 = vdwg.mxu0
    %232 = vmatpush.msra.mxu0 %v167
    %233 = vmatpush.msra.mxu0 %v163
    %234 = vmatpush.msra.mxu0 %v159
    %235 = vmatpush.msra.mxu0 %v155
    %236 = vmatpush.msra.mxu0 %v151
    %237 = vmatpush.msra.mxu0 %v147
    %238 = vmatpush.msra.mxu0 %v143
    %239 = vmatpush.msra.mxu0 %v139
    %240 = vmatpush.msra.mxu0 %v135
    %241 = vmatpush.msra.mxu0 %v131
    %242 = vmatpush.msra.mxu0 %v127
    %243 = vmatpush.msra.mxu0 %v123
    %244 = vmatpush.msra.mxu0 %v119
    %245 = vmatpush.msra.mxu0 %v115
    %246 = vmatpush.msra.mxu0 %v111
    %247 = vmatpush.msra.mxu0 %v107
    %248 = vmatmul.f32.gmra.mxu0 %v102
    %v249 = vpop.f32.mrf.mxu0
    %v250 = vadd.f32 0.0, %v249
    %251 = vdwg.mxu0
    %v252 = vadd.f32 %v168, %v190
    %v253 = vadd.f32 %v169, %v210
    %v254 = vadd.f32 %v170, %v230
    %v255 = vadd.f32 %v171, %v250
    %v256 = vmul.f32 %v252, 0.5
    %v257 = vtanh.pop %v256
    %v258 = vmul.f32 %v257, 0.5
    %v259 = vadd.f32 %v258, 0.5
    %v260 = vmul.f32 %v253, 0.5
    %v261 = vtanh.pop %v260
    %v262 = vmul.f32 %v261, 0.5
    %v263 = vadd.f32 %v262, 0.5
    %v264 = vtanh.pop %v254
    %v265 = vmul.f32 %v255, 0.5
    %v266 = vtanh.pop %v265
    %v267 = vmul.f32 %v266, 0.5
    %v268 = vadd.f32 %v267, 0.5
    %v269 = vmul.f32 %v263, %v103
    %v270 = vmul.f32 %v259, %v264
    %v271 = vadd.f32 %v269, %v270
    %v272 = vtanh.pop %v271
    %v273 = vmul.f32 %v268, %v272
    %s274 = scalar_lea.vmem [#allocation2], 32
    %v275 = vld [vmem:[%s274] sm:$0xff]
    %v276 = vld [vmem:[%s274 + $0x8] sm:$0xff]
    %v277 = vld [vmem:[%s274 + $0x10] sm:$0xff]
    %v278 = vld [vmem:[%s274 + $0x18] sm:$0xff]
    %279 = vmatpush.msra.mxu0 %v164
    %280 = vmatpush.msra.mxu0 %v160
    %281 = vmatpush.msra.mxu0 %v156
    %282 = vmatpush.msra.mxu0 %v152
    %283 = vmatpush.msra.mxu0 %v148
    %284 = vmatpush.msra.mxu0 %v144
    %285 = vmatpush.msra.mxu0 %v140
    %286 = vmatpush.msra.mxu0 %v136
    %287 = vmatpush.msra.mxu0 %v132
    %288 = vmatpush.msra.mxu0 %v128
    %289 = vmatpush.msra.mxu0 %v124
    %290 = vmatpush.msra.mxu0 %v120
    %291 = vmatpush.msra.mxu0 %v116
    %292 = vmatpush.msra.mxu0 %v112
    %293 = vmatpush.msra.mxu0 %v108
    %294 = vmatpush.msra.mxu0 %v104
    %295 = vmatmul.f32.gmra.mxu0 %v273
    %v296 = vpop.f32.mrf.mxu0
    %v297 = vadd.f32 0.0, %v296
    %298 = vdwg.mxu0
    %299 = vmatpush.msra.mxu0 %v165
    %300 = vmatpush.msra.mxu0 %v161
    %301 = vmatpush.msra.mxu0 %v157
    %302 = vmatpush.msra.mxu0 %v153
    %303 = vmatpush.msra.mxu0 %v149
    %304 = vmatpush.msra.mxu0 %v145
    %305 = vmatpush.msra.mxu0 %v141
    %306 = vmatpush.msra.mxu0 %v137
    %307 = vmatpush.msra.mxu0 %v133
    %308 = vmatpush.msra.mxu0 %v129
    %309 = vmatpush.msra.mxu0 %v125
    %310 = vmatpush.msra.mxu0 %v121
    %311 = vmatpush.msra.mxu0 %v117
    %312 = vmatpush.msra.mxu0 %v113
    %313 = vmatpush.msra.mxu0 %v109
    %314 = vmatpush.msra.mxu0 %v105
    %315 = vmatmul.f32.gmra.mxu0 %v273
    %v316 = vpop.f32.mrf.mxu0
    %v317 = vadd.f32 0.0, %v316
    %318 = vdwg.mxu0
    %319 = vmatpush.msra.mxu0 %v166
    %320 = vmatpush.msra.mxu0 %v162
    %321 = vmatpush.msra.mxu0 %v158
    %322 = vmatpush.msra.mxu0 %v154
    %323 = vmatpush.msra.mxu0 %v150
    %324 = vmatpush.msra.mxu0 %v146
    %325 = vmatpush.msra.mxu0 %v142
    %326 = vmatpush.msra.mxu0 %v138
    %327 = vmatpush.msra.mxu0 %v134
    %328 = vmatpush.msra.mxu0 %v130
    %329 = vmatpush.msra.mxu0 %v126
    %330 = vmatpush.msra.mxu0 %v122
    %331 = vmatpush.msra.mxu0 %v118
    %332 = vmatpush.msra.mxu0 %v114
    %333 = vmatpush.msra.mxu0 %v110
    %334 = vmatpush.msra.mxu0 %v106
    %335 = vmatmul.f32.gmra.mxu0 %v273
    %v336 = vpop.f32.mrf.mxu0
    %v337 = vadd.f32 0.0, %v336
    %338 = vdwg.mxu0
    %339 = vmatpush.msra.mxu0 %v167
    %340 = vmatpush.msra.mxu0 %v163
    %341 = vmatpush.msra.mxu0 %v159
    %342 = vmatpush.msra.mxu0 %v155
    %343 = vmatpush.msra.mxu0 %v151
    %344 = vmatpush.msra.mxu0 %v147
    %345 = vmatpush.msra.mxu0 %v143
    %346 = vmatpush.msra.mxu0 %v139
    %347 = vmatpush.msra.mxu0 %v135
    %348 = vmatpush.msra.mxu0 %v131
    %349 = vmatpush.msra.mxu0 %v127
    %350 = vmatpush.msra.mxu0 %v123
    %351 = vmatpush.msra.mxu0 %v119
    %352 = vmatpush.msra.mxu0 %v115
    %353 = vmatpush.msra.mxu0 %v111
    %354 = vmatpush.msra.mxu0 %v107
    %355 = vmatmul.f32.gmra.mxu0 %v273
    %v356 = vpop.f32.mrf.mxu0
    %v357 = vadd.f32 0.0, %v356
    %358 = vdwg.mxu0
    %v359 = vadd.f32 %v275, %v297
    %v360 = vadd.f32 %v276, %v317
    %v361 = vadd.f32 %v277, %v337
    %v362 = vadd.f32 %v278, %v357
    %v363 = vmul.f32 %v359, 0.5
    %v364 = vtanh.pop %v363
    %v365 = vmul.f32 %v364, 0.5
    %v366 = vadd.f32 %v365, 0.5
    %v367 = vmul.f32 %v360, 0.5
    %v368 = vtanh.pop %v367
    %v369 = vmul.f32 %v368, 0.5
    %v370 = vadd.f32 %v369, 0.5
    %v371 = vtanh.pop %v361
    %v372 = vmul.f32 %v362, 0.5
    %v373 = vtanh.pop %v372
    %v374 = vmul.f32 %v373, 0.5
    %v375 = vadd.f32 %v374, 0.5
    %v376 = vmul.f32 %v370, %v271
    %v377 = vmul.f32 %v366, %v371
    %v378 = vadd.f32 %v376, %v377
    %v379 = vtanh.pop %v378
    %v380 = vmul.f32 %v375, %v379
    %s381 = scalar_lea.vmem [#allocation2], 64
    %v382 = vld [vmem:[%s381] sm:$0xff]
    %v383 = vld [vmem:[%s381 + $0x8] sm:$0xff]
    %v384 = vld [vmem:[%s381 + $0x10] sm:$0xff]
    %v385 = vld [vmem:[%s381 + $0x18] sm:$0xff]
    %386 = vmatpush.msra.mxu0 %v164
    %387 = vmatpush.msra.mxu0 %v160
    %388 = vmatpush.msra.mxu0 %v156
    %389 = vmatpush.msra.mxu0 %v152
    %390 = vmatpush.msra.mxu0 %v148
    %391 = vmatpush.msra.mxu0 %v144
    %392 = vmatpush.msra.mxu0 %v140
    %393 = vmatpush.msra.mxu0 %v136
    %394 = vmatpush.msra.mxu0 %v132
    %395 = vmatpush.msra.mxu0 %v128
    %396 = vmatpush.msra.mxu0 %v124
    %397 = vmatpush.msra.mxu0 %v120
    %398 = vmatpush.msra.mxu0 %v116
    %399 = vmatpush.msra.mxu0 %v112
    %400 = vmatpush.msra.mxu0 %v108
    %401 = vmatpush.msra.mxu0 %v104
    %402 = vmatmul.f32.gmra.mxu0 %v380
    %v403 = vpop.f32.mrf.mxu0
    %v404 = vadd.f32 0.0, %v403
    %405 = vdwg.mxu0
    %406 = vmatpush.msra.mxu0 %v165
    %407 = vmatpush.msra.mxu0 %v161
    %408 = vmatpush.msra.mxu0 %v157
    %409 = vmatpush.msra.mxu0 %v153
    %410 = vmatpush.msra.mxu0 %v149
    %411 = vmatpush.msra.mxu0 %v145
    %412 = vmatpush.msra.mxu0 %v141
    %413 = vmatpush.msra.mxu0 %v137
    %414 = vmatpush.msra.mxu0 %v133
    %415 = vmatpush.msra.mxu0 %v129
    %416 = vmatpush.msra.mxu0 %v125
    %417 = vmatpush.msra.mxu0 %v121
    %418 = vmatpush.msra.mxu0 %v117
    %419 = vmatpush.msra.mxu0 %v113
    %420 = vmatpush.msra.mxu0 %v109
    %421 = vmatpush.msra.mxu0 %v105
    %422 = vmatmul.f32.gmra.mxu0 %v380
    %v423 = vpop.f32.mrf.mxu0
    %v424 = vadd.f32 0.0, %v423
    %425 = vdwg.mxu0
    %426 = vmatpush.msra.mxu0 %v166
    %427 = vmatpush.msra.mxu0 %v162
    %428 = vmatpush.msra.mxu0 %v158
    %429 = vmatpush.msra.mxu0 %v154
    %430 = vmatpush.msra.mxu0 %v150
    %431 = vmatpush.msra.mxu0 %v146
    %432 = vmatpush.msra.mxu0 %v142
    %433 = vmatpush.msra.mxu0 %v138
    %434 = vmatpush.msra.mxu0 %v134
    %435 = vmatpush.msra.mxu0 %v130
    %436 = vmatpush.msra.mxu0 %v126
    %437 = vmatpush.msra.mxu0 %v122
    %438 = vmatpush.msra.mxu0 %v118
    %439 = vmatpush.msra.mxu0 %v114
    %440 = vmatpush.msra.mxu0 %v110
    %441 = vmatpush.msra.mxu0 %v106
    %442 = vmatmul.f32.gmra.mxu0 %v380
    %v443 = vpop.f32.mrf.mxu0
    %v444 = vadd.f32 0.0, %v443
    %445 = vdwg.mxu0
    %446 = vmatpush.msra.mxu0 %v167
    %447 = vmatpush.msra.mxu0 %v163
    %448 = vmatpush.msra.mxu0 %v159
    %449 = vmatpush.msra.mxu0 %v155
    %450 = vmatpush.msra.mxu0 %v151
    %451 = vmatpush.msra.mxu0 %v147
    %452 = vmatpush.msra.mxu0 %v143
    %453 = vmatpush.msra.mxu0 %v139
    %454 = vmatpush.msra.mxu0 %v135
    %455 = vmatpush.msra.mxu0 %v131
    %456 = vmatpush.msra.mxu0 %v127
    %457 = vmatpush.msra.mxu0 %v123
    %458 = vmatpush.msra.mxu0 %v119
    %459 = vmatpush.msra.mxu0 %v115
    %460 = vmatpush.msra.mxu0 %v111
    %461 = vmatpush.msra.mxu0 %v107
    %462 = vmatmul.f32.gmra.mxu0 %v380
    %v463 = vpop.f32.mrf.mxu0
    %v464 = vadd.f32 0.0, %v463
    %465 = vdwg.mxu0
    %v466 = vadd.f32 %v382, %v404
    %v467 = vadd.f32 %v383, %v424
    %v468 = vadd.f32 %v384, %v444
    %v469 = vadd.f32 %v385, %v464
    %v470 = vmul.f32 %v466, 0.5
    %v471 = vtanh.pop %v470
    %v472 = vmul.f32 %v471, 0.5
    %v473 = vadd.f32 %v472, 0.5
    %v474 = vmul.f32 %v467, 0.5
    %v475 = vtanh.pop %v474
    %v476 = vmul.f32 %v475, 0.5
    %v477 = vadd.f32 %v476, 0.5
    %v478 = vtanh.pop %v468
    %v479 = vmul.f32 %v469, 0.5
    %v480 = vtanh.pop %v479
    %v481 = vmul.f32 %v480, 0.5
    %v482 = vadd.f32 %v481, 0.5
    %v483 = vmul.f32 %v477, %v378
    %v484 = vmul.f32 %v473, %v478
    %v485 = vadd.f32 %v483, %v484
    %v486 = vtanh.pop %v485
    %v487 = vmul.f32 %v482, %v486
    %s488 = scalar_lea.vmem [#allocation2], 96
    %v489 = vld [vmem:[%s488] sm:$0xff]
    %v490 = vld [vmem:[%s488 + $0x8] sm:$0xff]
    %v491 = vld [vmem:[%s488 + $0x10] sm:$0xff]
    %v492 = vld [vmem:[%s488 + $0x18] sm:$0xff]
    %493 = vmatpush.msra.mxu0 %v164
    %494 = vmatpush.msra.mxu0 %v160
    %495 = vmatpush.msra.mxu0 %v156
    %496 = vmatpush.msra.mxu0 %v152
    %497 = vmatpush.msra.mxu0 %v148
    %498 = vmatpush.msra.mxu0 %v144
    %499 = vmatpush.msra.mxu0 %v140
    %500 = vmatpush.msra.mxu0 %v136
    %501 = vmatpush.msra.mxu0 %v132
    %502 = vmatpush.msra.mxu0 %v128
    %503 = vmatpush.msra.mxu0 %v124
    %504 = vmatpush.msra.mxu0 %v120
    %505 = vmatpush.msra.mxu0 %v116
    %506 = vmatpush.msra.mxu0 %v112
    %507 = vmatpush.msra.mxu0 %v108
    %508 = vmatpush.msra.mxu0 %v104
    %509 = vmatmul.f32.gmra.mxu0 %v487
    %v510 = vpop.f32.mrf.mxu0
    %v511 = vadd.f32 0.0, %v510
    %512 = vdwg.mxu0
    %513 = vmatpush.msra.mxu0 %v165
    %514 = vmatpush.msra.mxu0 %v161
    %515 = vmatpush.msra.mxu0 %v157
    %516 = vmatpush.msra.mxu0 %v153
    %517 = vmatpush.msra.mxu0 %v149
    %518 = vmatpush.msra.mxu0 %v145
    %519 = vmatpush.msra.mxu0 %v141
    %520 = vmatpush.msra.mxu0 %v137
    %521 = vmatpush.msra.mxu0 %v133
    %522 = vmatpush.msra.mxu0 %v129
    %523 = vmatpush.msra.mxu0 %v125
    %524 = vmatpush.msra.mxu0 %v121
    %525 = vmatpush.msra.mxu0 %v117
    %526 = vmatpush.msra.mxu0 %v113
    %527 = vmatpush.msra.mxu0 %v109
    %528 = vmatpush.msra.mxu0 %v105
    %529 = vmatmul.f32.gmra.mxu0 %v487
    %v530 = vpop.f32.mrf.mxu0
    %v531 = vadd.f32 0.0, %v530
    %532 = vdwg.mxu0
    %533 = vmatpush.msra.mxu0 %v166
    %534 = vmatpush.msra.mxu0 %v162
    %535 = vmatpush.msra.mxu0 %v158
    %536 = vmatpush.msra.mxu0 %v154
    %537 = vmatpush.msra.mxu0 %v150
    %538 = vmatpush.msra.mxu0 %v146
    %539 = vmatpush.msra.mxu0 %v142
    %540 = vmatpush.msra.mxu0 %v138
    %541 = vmatpush.msra.mxu0 %v134
    %542 = vmatpush.msra.mxu0 %v130
    %543 = vmatpush.msra.mxu0 %v126
    %544 = vmatpush.msra.mxu0 %v122
    %545 = vmatpush.msra.mxu0 %v118
    %546 = vmatpush.msra.mxu0 %v114
    %547 = vmatpush.msra.mxu0 %v110
    %548 = vmatpush.msra.mxu0 %v106
    %549 = vmatmul.f32.gmra.mxu0 %v487
    %v550 = vpop.f32.mrf.mxu0
    %v551 = vadd.f32 0.0, %v550
    %552 = vdwg.mxu0
    %553 = vmatpush.msra.mxu0 %v167
    %554 = vmatpush.msra.mxu0 %v163
    %555 = vmatpush.msra.mxu0 %v159
    %556 = vmatpush.msra.mxu0 %v155
    %557 = vmatpush.msra.mxu0 %v151
    %558 = vmatpush.msra.mxu0 %v147
    %559 = vmatpush.msra.mxu0 %v143
    %560 = vmatpush.msra.mxu0 %v139
    %561 = vmatpush.msra.mxu0 %v135
    %562 = vmatpush.msra.mxu0 %v131
    %563 = vmatpush.msra.mxu0 %v127
    %564 = vmatpush.msra.mxu0 %v123
    %565 = vmatpush.msra.mxu0 %v119
    %566 = vmatpush.msra.mxu0 %v115
    %567 = vmatpush.msra.mxu0 %v111
    %568 = vmatpush.msra.mxu0 %v107
    %569 = vmatmul.f32.gmra.mxu0 %v487
    %v570 = vpop.f32.mrf.mxu0
    %v571 = vadd.f32 0.0, %v570
    %572 = vdwg.mxu0
    %v573 = vadd.f32 %v489, %v511
    %v574 = vadd.f32 %v490, %v531
    %v575 = vadd.f32 %v491, %v551
    %v576 = vadd.f32 %v492, %v571
    %v577 = vmul.f32 %v573, 0.5
    %v578 = vtanh.pop %v577
    %v579 = vmul.f32 %v578, 0.5
    %v580 = vadd.f32 %v579, 0.5
    %v581 = vmul.f32 %v574, 0.5
    %v582 = vtanh.pop %v581
    %v583 = vmul.f32 %v582, 0.5
    %v584 = vadd.f32 %v583, 0.5
    %v585 = vtanh.pop %v575
    %v586 = vmul.f32 %v576, 0.5
    %v587 = vtanh.pop %v586
    %v588 = vmul.f32 %v587, 0.5
    %v589 = vadd.f32 %v588, 0.5
    %v590 = vmul.f32 %v584, %v485
    %v591 = vmul.f32 %v580, %v585
    %v592 = vadd.f32 %v590, %v591
    %v593 = vtanh.pop %v592
    %v594 = vmul.f32 %v589, %v593
    %s595 = scalar_lea.vmem [#allocation2], 128
    %v596 = vld [vmem:[%s595] sm:$0xff]
    %v597 = vld [vmem:[%s595 + $0x8] sm:$0xff]
    %v598 = vld [vmem:[%s595 + $0x10] sm:$0xff]
    %v599 = vld [vmem:[%s595 + $0x18] sm:$0xff]
    %600 = vmatpush.msra.mxu0 %v164
    %601 = vmatpush.msra.mxu0 %v160
    %602 = vmatpush.msra.mxu0 %v156
    %603 = vmatpush.msra.mxu0 %v152
    %604 = vmatpush.msra.mxu0 %v148
    %605 = vmatpush.msra.mxu0 %v144
    %606 = vmatpush.msra.mxu0 %v140
    %607 = vmatpush.msra.mxu0 %v136
    %608 = vmatpush.msra.mxu0 %v132
    %609 = vmatpush.msra.mxu0 %v128
    %610 = vmatpush.msra.mxu0 %v124
    %611 = vmatpush.msra.mxu0 %v120
    %612 = vmatpush.msra.mxu0 %v116
    %613 = vmatpush.msra.mxu0 %v112
    %614 = vmatpush.msra.mxu0 %v108
    %615 = vmatpush.msra.mxu0 %v104
    %616 = vmatmul.f32.gmra.mxu0 %v594
    %v617 = vpop.f32.mrf.mxu0
    %v618 = vadd.f32 0.0, %v617
    %619 = vdwg.mxu0
    %620 = vmatpush.msra.mxu0 %v165
    %621 = vmatpush.msra.mxu0 %v161
    %622 = vmatpush.msra.mxu0 %v157
    %623 = vmatpush.msra.mxu0 %v153
    %624 = vmatpush.msra.mxu0 %v149
    %625 = vmatpush.msra.mxu0 %v145
    %626 = vmatpush.msra.mxu0 %v141
    %627 = vmatpush.msra.mxu0 %v137
    %628 = vmatpush.msra.mxu0 %v133
    %629 = vmatpush.msra.mxu0 %v129
    %630 = vmatpush.msra.mxu0 %v125
    %631 = vmatpush.msra.mxu0 %v121
    %632 = vmatpush.msra.mxu0 %v117
    %633 = vmatpush.msra.mxu0 %v113
    %634 = vmatpush.msra.mxu0 %v109
    %635 = vmatpush.msra.mxu0 %v105
    %636 = vmatmul.f32.gmra.mxu0 %v594
    %v637 = vpop.f32.mrf.mxu0
    %v638 = vadd.f32 0.0, %v637
    %639 = vdwg.mxu0
    %640 = vmatpush.msra.mxu0 %v166
    %641 = vmatpush.msra.mxu0 %v162
    %642 = vmatpush.msra.mxu0 %v158
    %643 = vmatpush.msra.mxu0 %v154
    %644 = vmatpush.msra.mxu0 %v150
    %645 = vmatpush.msra.mxu0 %v146
    %646 = vmatpush.msra.mxu0 %v142
    %647 = vmatpush.msra.mxu0 %v138
    %648 = vmatpush.msra.mxu0 %v134
    %649 = vmatpush.msra.mxu0 %v130
    %650 = vmatpush.msra.mxu0 %v126
    %651 = vmatpush.msra.mxu0 %v122
    %652 = vmatpush.msra.mxu0 %v118
    %653 = vmatpush.msra.mxu0 %v114
    %654 = vmatpush.msra.mxu0 %v110
    %655 = vmatpush.msra.mxu0 %v106
    %656 = vmatmul.f32.gmra.mxu0 %v594
    %v657 = vpop.f32.mrf.mxu0
    %v658 = vadd.f32 0.0, %v657
    %659 = vdwg.mxu0
    %660 = vmatpush.msra.mxu0 %v167
    %661 = vmatpush.msra.mxu0 %v163
    %662 = vmatpush.msra.mxu0 %v159
    %663 = vmatpush.msra.mxu0 %v155
    %664 = vmatpush.msra.mxu0 %v151
    %665 = vmatpush.msra.mxu0 %v147
    %666 = vmatpush.msra.mxu0 %v143
    %667 = vmatpush.msra.mxu0 %v139
    %668 = vmatpush.msra.mxu0 %v135
    %669 = vmatpush.msra.mxu0 %v131
    %670 = vmatpush.msra.mxu0 %v127
    %671 = vmatpush.msra.mxu0 %v123
    %672 = vmatpush.msra.mxu0 %v119
    %673 = vmatpush.msra.mxu0 %v115
    %674 = vmatpush.msra.mxu0 %v111
    %675 = vmatpush.msra.mxu0 %v107
    %676 = vmatmul.f32.gmra.mxu0 %v594
    %v677 = vpop.f32.mrf.mxu0
    %v678 = vadd.f32 0.0, %v677
    %679 = vdwg.mxu0
    %v680 = vadd.f32 %v596, %v618
    %v681 = vadd.f32 %v597, %v638
    %v682 = vadd.f32 %v598, %v658
    %v683 = vadd.f32 %v599, %v678
    %v684 = vmul.f32 %v680, 0.5
    %v685 = vtanh.pop %v684
    %v686 = vmul.f32 %v685, 0.5
    %v687 = vadd.f32 %v686, 0.5
    %v688 = vmul.f32 %v681, 0.5
    %v689 = vtanh.pop %v688
    %v690 = vmul.f32 %v689, 0.5
    %v691 = vadd.f32 %v690, 0.5
    %v692 = vtanh.pop %v682
    %v693 = vmul.f32 %v683, 0.5
    %v694 = vtanh.pop %v693
    %v695 = vmul.f32 %v694, 0.5
    %v696 = vadd.f32 %v695, 0.5
    %v697 = vmul.f32 %v691, %v592
    %v698 = vmul.f32 %v687, %v692
    %v699 = vadd.f32 %v697, %v698
    %v700 = vtanh.pop %v699
    %v701 = vmul.f32 %v696, %v700
    %s702 = scalar_lea.vmem [#allocation2], 160
    %v703 = vld [vmem:[%s702] sm:$0xff]
    %v704 = vld [vmem:[%s702 + $0x8] sm:$0xff]
    %v705 = vld [vmem:[%s702 + $0x10] sm:$0xff]
    %v706 = vld [vmem:[%s702 + $0x18] sm:$0xff]
    %707 = vmatpush.msra.mxu0 %v164
    %708 = vmatpush.msra.mxu0 %v160
    %709 = vmatpush.msra.mxu0 %v156
    %710 = vmatpush.msra.mxu0 %v152
    %711 = vmatpush.msra.mxu0 %v148
    %712 = vmatpush.msra.mxu0 %v144
    %713 = vmatpush.msra.mxu0 %v140
    %714 = vmatpush.msra.mxu0 %v136
    %715 = vmatpush.msra.mxu0 %v132
    %716 = vmatpush.msra.mxu0 %v128
    %717 = vmatpush.msra.mxu0 %v124
    %718 = vmatpush.msra.mxu0 %v120
    %719 = vmatpush.msra.mxu0 %v116
    %720 = vmatpush.msra.mxu0 %v112
    %721 = vmatpush.msra.mxu0 %v108
    %722 = vmatpush.msra.mxu0 %v104
    %723 = vmatmul.f32.gmra.mxu0 %v701
    %v724 = vpop.f32.mrf.mxu0
    %v725 = vadd.f32 0.0, %v724
    %726 = vdwg.mxu0
    %727 = vmatpush.msra.mxu0 %v165
    %728 = vmatpush.msra.mxu0 %v161
    %729 = vmatpush.msra.mxu0 %v157
    %730 = vmatpush.msra.mxu0 %v153
    %731 = vmatpush.msra.mxu0 %v149
    %732 = vmatpush.msra.mxu0 %v145
    %733 = vmatpush.msra.mxu0 %v141
    %734 = vmatpush.msra.mxu0 %v137
    %735 = vmatpush.msra.mxu0 %v133
    %736 = vmatpush.msra.mxu0 %v129
    %737 = vmatpush.msra.mxu0 %v125
    %738 = vmatpush.msra.mxu0 %v121
    %739 = vmatpush.msra.mxu0 %v117
    %740 = vmatpush.msra.mxu0 %v113
    %741 = vmatpush.msra.mxu0 %v109
    %742 = vmatpush.msra.mxu0 %v105
    %743 = vmatmul.f32.gmra.mxu0 %v701
    %v744 = vpop.f32.mrf.mxu0
    %v745 = vadd.f32 0.0, %v744
    %746 = vdwg.mxu0
    %747 = vmatpush.msra.mxu0 %v166
    %748 = vmatpush.msra.mxu0 %v162
    %749 = vmatpush.msra.mxu0 %v158
    %750 = vmatpush.msra.mxu0 %v154
    %751 = vmatpush.msra.mxu0 %v150
    %752 = vmatpush.msra.mxu0 %v146
    %753 = vmatpush.msra.mxu0 %v142
    %754 = vmatpush.msra.mxu0 %v138
    %755 = vmatpush.msra.mxu0 %v134
    %756 = vmatpush.msra.mxu0 %v130
    %757 = vmatpush.msra.mxu0 %v126
    %758 = vmatpush.msra.mxu0 %v122
    %759 = vmatpush.msra.mxu0 %v118
    %760 = vmatpush.msra.mxu0 %v114
    %761 = vmatpush.msra.mxu0 %v110
    %762 = vmatpush.msra.mxu0 %v106
    %763 = vmatmul.f32.gmra.mxu0 %v701
    %v764 = vpop.f32.mrf.mxu0
    %v765 = vadd.f32 0.0, %v764
    %766 = vdwg.mxu0
    %767 = vmatpush.msra.mxu0 %v167
    %768 = vmatpush.msra.mxu0 %v163
    %769 = vmatpush.msra.mxu0 %v159
    %770 = vmatpush.msra.mxu0 %v155
    %771 = vmatpush.msra.mxu0 %v151
    %772 = vmatpush.msra.mxu0 %v147
    %773 = vmatpush.msra.mxu0 %v143
    %774 = vmatpush.msra.mxu0 %v139
    %775 = vmatpush.msra.mxu0 %v135
    %776 = vmatpush.msra.mxu0 %v131
    %777 = vmatpush.msra.mxu0 %v127
    %778 = vmatpush.msra.mxu0 %v123
    %779 = vmatpush.msra.mxu0 %v119
    %780 = vmatpush.msra.mxu0 %v115
    %781 = vmatpush.msra.mxu0 %v111
    %782 = vmatpush.msra.mxu0 %v107
    %783 = vmatmul.f32.gmra.mxu0 %v701
    %v784 = vpop.f32.mrf.mxu0
    %v785 = vadd.f32 0.0, %v784
    %786 = vdwg.mxu0
    %v787 = vadd.f32 %v703, %v725
    %v788 = vadd.f32 %v704, %v745
    %v789 = vadd.f32 %v705, %v765
    %v790 = vadd.f32 %v706, %v785
    %v791 = vmul.f32 %v787, 0.5
    %v792 = vtanh.pop %v791
    %v793 = vmul.f32 %v792, 0.5
    %v794 = vadd.f32 %v793, 0.5
    %v795 = vmul.f32 %v788, 0.5
    %v796 = vtanh.pop %v795
    %v797 = vmul.f32 %v796, 0.5
    %v798 = vadd.f32 %v797, 0.5
    %v799 = vtanh.pop %v789
    %v800 = vmul.f32 %v790, 0.5
    %v801 = vtanh.pop %v800
    %v802 = vmul.f32 %v801, 0.5
    %v803 = vadd.f32 %v802, 0.5
    %v804 = vmul.f32 %v798, %v699
    %v805 = vmul.f32 %v794, %v799
    %v806 = vadd.f32 %v804, %v805
    %v807 = vtanh.pop %v806
    %v808 = vmul.f32 %v803, %v807
    %s809 = scalar_lea.vmem [#allocation2], 192
    %v810 = vld [vmem:[%s809] sm:$0xff]
    %v811 = vld [vmem:[%s809 + $0x8] sm:$0xff]
    %v812 = vld [vmem:[%s809 + $0x10] sm:$0xff]
    %v813 = vld [vmem:[%s809 + $0x18] sm:$0xff]
    %814 = vmatpush.msra.mxu0 %v164
    %815 = vmatpush.msra.mxu0 %v160
    %816 = vmatpush.msra.mxu0 %v156
    %817 = vmatpush.msra.mxu0 %v152
    %818 = vmatpush.msra.mxu0 %v148
    %819 = vmatpush.msra.mxu0 %v144
    %820 = vmatpush.msra.mxu0 %v140
    %821 = vmatpush.msra.mxu0 %v136
    %822 = vmatpush.msra.mxu0 %v132
    %823 = vmatpush.msra.mxu0 %v128
    %824 = vmatpush.msra.mxu0 %v124
    %825 = vmatpush.msra.mxu0 %v120
    %826 = vmatpush.msra.mxu0 %v116
    %827 = vmatpush.msra.mxu0 %v112
    %828 = vmatpush.msra.mxu0 %v108
    %829 = vmatpush.msra.mxu0 %v104
    %830 = vmatmul.f32.gmra.mxu0 %v808
    %v831 = vpop.f32.mrf.mxu0
    %v832 = vadd.f32 0.0, %v831
    %833 = vdwg.mxu0
    %834 = vmatpush.msra.mxu0 %v165
    %835 = vmatpush.msra.mxu0 %v161
    %836 = vmatpush.msra.mxu0 %v157
    %837 = vmatpush.msra.mxu0 %v153
    %838 = vmatpush.msra.mxu0 %v149
    %839 = vmatpush.msra.mxu0 %v145
    %840 = vmatpush.msra.mxu0 %v141
    %841 = vmatpush.msra.mxu0 %v137
    %842 = vmatpush.msra.mxu0 %v133
    %843 = vmatpush.msra.mxu0 %v129
    %844 = vmatpush.msra.mxu0 %v125
    %845 = vmatpush.msra.mxu0 %v121
    %846 = vmatpush.msra.mxu0 %v117
    %847 = vmatpush.msra.mxu0 %v113
    %848 = vmatpush.msra.mxu0 %v109
    %849 = vmatpush.msra.mxu0 %v105
    %850 = vmatmul.f32.gmra.mxu0 %v808
    %v851 = vpop.f32.mrf.mxu0
    %v852 = vadd.f32 0.0, %v851
    %853 = vdwg.mxu0
    %854 = vmatpush.msra.mxu0 %v166
    %855 = vmatpush.msra.mxu0 %v162
    %856 = vmatpush.msra.mxu0 %v158
    %857 = vmatpush.msra.mxu0 %v154
    %858 = vmatpush.msra.mxu0 %v150
    %859 = vmatpush.msra.mxu0 %v146
    %860 = vmatpush.msra.mxu0 %v142
    %861 = vmatpush.msra.mxu0 %v138
    %862 = vmatpush.msra.mxu0 %v134
    %863 = vmatpush.msra.mxu0 %v130
    %864 = vmatpush.msra.mxu0 %v126
    %865 = vmatpush.msra.mxu0 %v122
    %866 = vmatpush.msra.mxu0 %v118
    %867 = vmatpush.msra.mxu0 %v114
    %868 = vmatpush.msra.mxu0 %v110
    %869 = vmatpush.msra.mxu0 %v106
    %870 = vmatmul.f32.gmra.mxu0 %v808
    %v871 = vpop.f32.mrf.mxu0
    %v872 = vadd.f32 0.0, %v871
    %873 = vdwg.mxu0
    %874 = vmatpush.msra.mxu0 %v167
    %875 = vmatpush.msra.mxu0 %v163
    %876 = vmatpush.msra.mxu0 %v159
    %877 = vmatpush.msra.mxu0 %v155
    %878 = vmatpush.msra.mxu0 %v151
    %879 = vmatpush.msra.mxu0 %v147
    %880 = vmatpush.msra.mxu0 %v143
    %881 = vmatpush.msra.mxu0 %v139
    %882 = vmatpush.msra.mxu0 %v135
    %883 = vmatpush.msra.mxu0 %v131
    %884 = vmatpush.msra.mxu0 %v127
    %885 = vmatpush.msra.mxu0 %v123
    %886 = vmatpush.msra.mxu0 %v119
    %887 = vmatpush.msra.mxu0 %v115
    %888 = vmatpush.msra.mxu0 %v111
    %889 = vmatpush.msra.mxu0 %v107
    %890 = vmatmul.f32.gmra.mxu0 %v808
    %v891 = vpop.f32.mrf.mxu0
    %v892 = vadd.f32 0.0, %v891
    %893 = vdwg.mxu0
    %v894 = vadd.f32 %v810, %v832
    %v895 = vadd.f32 %v811, %v852
    %v896 = vadd.f32 %v812, %v872
    %v897 = vadd.f32 %v813, %v892
    %v898 = vmul.f32 %v894, 0.5
    %v899 = vtanh.pop %v898
    %v900 = vmul.f32 %v899, 0.5
    %v901 = vadd.f32 %v900, 0.5
    %v902 = vmul.f32 %v895, 0.5
    %v903 = vtanh.pop %v902
    %v904 = vmul.f32 %v903, 0.5
    %v905 = vadd.f32 %v904, 0.5
    %v906 = vtanh.pop %v896
    %v907 = vmul.f32 %v897, 0.5
    %v908 = vtanh.pop %v907
    %v909 = vmul.f32 %v908, 0.5
    %v910 = vadd.f32 %v909, 0.5
    %v911 = vmul.f32 %v905, %v806
    %v912 = vmul.f32 %v901, %v906
    %v913 = vadd.f32 %v911, %v912
    %v914 = vtanh.pop %v913
    %v915 = vmul.f32 %v910, %v914
    %s916 = scalar_lea.vmem [#allocation2], 224
    %v917 = vld [vmem:[%s916] sm:$0xff]
    %v918 = vld [vmem:[%s916 + $0x8] sm:$0xff]
    %v919 = vld [vmem:[%s916 + $0x10] sm:$0xff]
    %v920 = vld [vmem:[%s916 + $0x18] sm:$0xff]
    %921 = vmatpush.msra.mxu0 %v164
    %922 = vmatpush.msra.mxu0 %v160
    %923 = vmatpush.msra.mxu0 %v156
    %924 = vmatpush.msra.mxu0 %v152
    %925 = vmatpush.msra.mxu0 %v148
    %926 = vmatpush.msra.mxu0 %v144
    %927 = vmatpush.msra.mxu0 %v140
    %928 = vmatpush.msra.mxu0 %v136
    %929 = vmatpush.msra.mxu0 %v132
    %930 = vmatpush.msra.mxu0 %v128
    %931 = vmatpush.msra.mxu0 %v124
    %932 = vmatpush.msra.mxu0 %v120
    %933 = vmatpush.msra.mxu0 %v116
    %934 = vmatpush.msra.mxu0 %v112
    %935 = vmatpush.msra.mxu0 %v108
    %936 = vmatpush.msra.mxu0 %v104
    %937 = vmatmul.f32.gmra.mxu0 %v915
    %v938 = vpop.f32.mrf.mxu0
    %v939 = vadd.f32 0.0, %v938
    %940 = vdwg.mxu0
    %941 = vmatpush.msra.mxu0 %v165
    %942 = vmatpush.msra.mxu0 %v161
    %943 = vmatpush.msra.mxu0 %v157
    %944 = vmatpush.msra.mxu0 %v153
    %945 = vmatpush.msra.mxu0 %v149
    %946 = vmatpush.msra.mxu0 %v145
    %947 = vmatpush.msra.mxu0 %v141
    %948 = vmatpush.msra.mxu0 %v137
    %949 = vmatpush.msra.mxu0 %v133
    %950 = vmatpush.msra.mxu0 %v129
    %951 = vmatpush.msra.mxu0 %v125
    %952 = vmatpush.msra.mxu0 %v121
    %953 = vmatpush.msra.mxu0 %v117
    %954 = vmatpush.msra.mxu0 %v113
    %955 = vmatpush.msra.mxu0 %v109
    %956 = vmatpush.msra.mxu0 %v105
    %957 = vmatmul.f32.gmra.mxu0 %v915
    %v958 = vpop.f32.mrf.mxu0
    %v959 = vadd.f32 0.0, %v958
    %960 = vdwg.mxu0
    %961 = vmatpush.msra.mxu0 %v166
    %962 = vmatpush.msra.mxu0 %v162
    %963 = vmatpush.msra.mxu0 %v158
    %964 = vmatpush.msra.mxu0 %v154
    %965 = vmatpush.msra.mxu0 %v150
    %966 = vmatpush.msra.mxu0 %v146
    %967 = vmatpush.msra.mxu0 %v142
    %968 = vmatpush.msra.mxu0 %v138
    %969 = vmatpush.msra.mxu0 %v134
    %970 = vmatpush.msra.mxu0 %v130
    %971 = vmatpush.msra.mxu0 %v126
    %972 = vmatpush.msra.mxu0 %v122
    %973 = vmatpush.msra.mxu0 %v118
    %974 = vmatpush.msra.mxu0 %v114
    %975 = vmatpush.msra.mxu0 %v110
    %976 = vmatpush.msra.mxu0 %v106
    %977 = vmatmul.f32.gmra.mxu0 %v915
    %v978 = vpop.f32.mrf.mxu0
    %v979 = vadd.f32 0.0, %v978
    %980 = vdwg.mxu0
    %981 = vmatpush.msra.mxu0 %v167
    %982 = vmatpush.msra.mxu0 %v163
    %983 = vmatpush.msra.mxu0 %v159
    %984 = vmatpush.msra.mxu0 %v155
    %985 = vmatpush.msra.mxu0 %v151
    %986 = vmatpush.msra.mxu0 %v147
    %987 = vmatpush.msra.mxu0 %v143
    %988 = vmatpush.msra.mxu0 %v139
    %989 = vmatpush.msra.mxu0 %v135
    %990 = vmatpush.msra.mxu0 %v131
    %991 = vmatpush.msra.mxu0 %v127
    %992 = vmatpush.msra.mxu0 %v123
    %993 = vmatpush.msra.mxu0 %v119
    %994 = vmatpush.msra.mxu0 %v115
    %995 = vmatpush.msra.mxu0 %v111
    %996 = vmatpush.msra.mxu0 %v107
    %997 = vmatmul.f32.gmra.mxu0 %v915
    %v998 = vpop.f32.mrf.mxu0
    %v999 = vadd.f32 0.0, %v998
    %1000 = vdwg.mxu0
    %v1001 = vadd.f32 %v917, %v939
    %v1002 = vadd.f32 %v918, %v959
    %v1003 = vadd.f32 %v919, %v979
    %v1004 = vadd.f32 %v920, %v999
    %v1005 = vmul.f32 %v1001, 0.5
    %v1006 = vtanh.pop %v1005
    %v1007 = vmul.f32 %v1006, 0.5
    %v1008 = vadd.f32 %v1007, 0.5
    %v1009 = vmul.f32 %v1002, 0.5
    %v1010 = vtanh.pop %v1009
    %v1011 = vmul.f32 %v1010, 0.5
    %v1012 = vadd.f32 %v1011, 0.5
    %v1013 = vtanh.pop %v1003
    %v1014 = vmul.f32 %v1004, 0.5
    %v1015 = vtanh.pop %v1014
    %v1016 = vmul.f32 %v1015, 0.5
    %v1017 = vadd.f32 %v1016, 0.5
    %v1018 = vmul.f32 %v1012, %v913
    %v1019 = vmul.f32 %v1008, %v1013
    %v1020 = vadd.f32 %v1018, %v1019
    %v1021 = vtanh.pop %v1020
    %v1022 = vmul.f32 %v1017, %v1021
    %1023 = vst [vmem:[#allocation12] sm:$0xff] %v1022
    %1024 = vst [vmem:[#allocation14] sm:$0xff] %v1020
    %v1025 = vld [vmem:[#allocation10] sm:$0xff]
    %v1026 = vld [vmem:[#allocation10 + $0x8] sm:$0xff]
    %v1027 = vld [vmem:[#allocation10 + $0x10] sm:$0xff]
    %v1028 = vld [vmem:[#allocation10 + $0x18] sm:$0xff]
    %v1029 = vld [vmem:[#allocation10 + $0x20] sm:$0xff]
    %v1030 = vld [vmem:[#allocation10 + $0x28] sm:$0xff]
    %v1031 = vld [vmem:[#allocation10 + $0x30] sm:$0xff]
    %v1032 = vld [vmem:[#allocation10 + $0x38] sm:$0xff]
    %v1033 = vld [vmem:[#allocation10 + $0x40] sm:$0xff]
    %v1034 = vld [vmem:[#allocation10 + $0x48] sm:$0xff]
    %v1035 = vld [vmem:[#allocation10 + $0x50] sm:$0xff]
    %v1036 = vld [vmem:[#allocation10 + $0x58] sm:$0xff]
    %v1037 = vld [vmem:[#allocation10 + $0x60] sm:$0xff]
    %v1038 = vld [vmem:[#allocation10 + $0x68] sm:$0xff]
    %v1039 = vld [vmem:[#allocation10 + $0x70] sm:$0xff]
    %v1040 = vld [vmem:[#allocation10 + $0x78] sm:$0xff]
    %v1041 = vld [vmem:[%s5] sm:$0x1]
    %v1043 = vperm.slane %v1041, 0
    %1045 = vmatpush.msra.mxu0 %v1040
    %1046 = vmatpush.msra.mxu0 %v1039
    %1047 = vmatpush.msra.mxu0 %v1038
    %1048 = vmatpush.msra.mxu0 %v1037
    %1049 = vmatpush.msra.mxu0 %v1036
    %1050 = vmatpush.msra.mxu0 %v1035
    %1051 = vmatpush.msra.mxu0 %v1034
    %1052 = vmatpush.msra.mxu0 %v1033
    %1053 = vmatpush.msra.mxu0 %v1032
    %1054 = vmatpush.msra.mxu0 %v1031
    %1055 = vmatpush.msra.mxu0 %v1030
    %1056 = vmatpush.msra.mxu0 %v1029
    %1057 = vmatpush.msra.mxu0 %v1028
    %1058 = vmatpush.msra.mxu0 %v1027
    %1059 = vmatpush.msra.mxu0 %v1026
    %1060 = vmatpush.msra.mxu0 %v1025
    %1061 = vmatmul.f32.gmra.mxu0 %v273
    %v1062 = vpop.f32.mrf.mxu0
    %v1063 = vadd.f32 %v1043, %v1062
    %1064 = vmatmul.f32.gmra.mxu0 %v380
    %v1065 = vpop.f32.mrf.mxu0
    %v1066 = vadd.f32 %v1043, %v1065
    %1067 = vmatmul.f32.gmra.mxu0 %v487
    %v1068 = vpop.f32.mrf.mxu0
    %v1069 = vadd.f32 %v1043, %v1068
    %1070 = vmatmul.f32.gmra.mxu0 %v594
    %v1071 = vpop.f32.mrf.mxu0
    %v1072 = vadd.f32 %v1043, %v1071
    %1073 = vmatmul.f32.gmra.mxu0 %v701
    %v1074 = vpop.f32.mrf.mxu0
    %v1075 = vadd.f32 %v1043, %v1074
    %1076 = vmatmul.f32.gmra.mxu0 %v808
    %v1077 = vpop.f32.mrf.mxu0
    %v1078 = vadd.f32 %v1043, %v1077
    %1079 = vmatmul.f32.gmra.mxu0 %v915
    %v1080 = vpop.f32.mrf.mxu0
    %v1081 = vadd.f32 %v1043, %v1080
    %1082 = vmatmul.f32.gmra.mxu0 %v1022
    %v1083 = vpop.f32.mrf.mxu0
    %v1084 = vadd.f32 %v1043, %v1083
    %1085 = vdwg.mxu0
    %1086 = vst [vmem:[#allocation11] sm:$0xff] %v1063
    %1087 = vst [vmem:[#allocation11 + $0x8] sm:$0xff] %v1066
    %1088 = vst [vmem:[#allocation11 + $0x10] sm:$0xff] %v1069
    %1089 = vst [vmem:[#allocation11 + $0x18] sm:$0xff] %v1072
    %1090 = vst [vmem:[#allocation11 + $0x20] sm:$0xff] %v1075
    %1091 = vst [vmem:[#allocation11 + $0x28] sm:$0xff] %v1078
    %1092 = vst [vmem:[#allocation11 + $0x30] sm:$0xff] %v1081
    %1093 = vst [vmem:[#allocation11 + $0x38] sm:$0xff] %v1084
    // Predicated region
    $region46: #{tpu_custom_call.1} parent=1 // pred_check
      _
    $region47: #{tpu_custom_call.1} parent=1 // pred_check_branch
      %1095 = sbr.rel (0) target = $region49
    $region48: #{tpu_custom_call.1} parent=1 // pred_region
      %1097 = vsyncadd [#allocation4], 0
      %s1098 = sshll.u32 [#allocation11], 4
      %s1099 = int_to_ptr.vmem [resolvable:$true] %s1098
      %s1100 = sshll.u32 %s6, 4
      %s1101 = int_to_ptr.hbm [resolvable:$true] %s1100
      %1106 = dma.vmem_to_hbm [thread:$0]  %s1099, 1024, %s1101, [#allocation4], 128, 128, 8
    $region49: #{tpu_custom_call.1} parent=1 // pred_fallthru
      _
    // Predicated region
    $region50: #{tpu_custom_call.1} parent=1 // pred_check
      _
    $region51: #{tpu_custom_call.1} parent=1 // pred_check_branch
      %1108 = sbr.rel (0) target = $region53
    $region52: #{tpu_custom_call.1} parent=1 // pred_region
      %1110 = vsyncadd [#allocation13], 0
      %s1112 = sshll.u32 [#allocation12], 4
      %s1113 = int_to_ptr.vmem [resolvable:$true] %s1112
      %s1114 = sshll.u32 %s7, 4
      %s1115 = int_to_ptr.hbm [resolvable:$true] %s1114
      %1117 = dma.vmem_to_hbm [thread:$0]  %s1113, 128, %s1115, [#allocation13]
    $region53: #{tpu_custom_call.1} parent=1 // pred_fallthru
      _
    // Predicated region
    $region54: #{tpu_custom_call.1} parent=1 // pred_check
      _
    $region55: #{tpu_custom_call.1} parent=1 // pred_check_branch
      %1119 = sbr.rel (0) target = $region57
    $region56: #{tpu_custom_call.1} parent=1 // pred_region
      %1121 = vsyncadd [#allocation13], 0
      %s1123 = sshll.u32 [#allocation14], 4
      %s1124 = int_to_ptr.vmem [resolvable:$true] %s1123
      %s1125 = sshll.u32 %s8, 4
      %s1126 = int_to_ptr.hbm [resolvable:$true] %s1125
      %1128 = dma.vmem_to_hbm [thread:$0]  %s1124, 128, %s1126, [#allocation13]
    $region57: #{tpu_custom_call.1} parent=1 // pred_fallthru
      _
    // Predicated region
    $region58: #{tpu_custom_call.1} parent=1 // pred_check
      _
    $region59: #{tpu_custom_call.1} parent=1 // pred_check_branch
      %1130 = sbr.rel (0) target = $region61
    $region60: #{tpu_custom_call.1} parent=1 // pred_region
      %1132 = dma.done [#allocation4], 1024
    $region61: #{tpu_custom_call.1} parent=1 // pred_fallthru
      _
    // Predicated region
    $region62: #{tpu_custom_call.1} parent=1 // pred_check
      _
    $region63: #{tpu_custom_call.1} parent=1 // pred_check_branch
      %1134 = sbr.rel (0) target = $region65
    $region64: #{tpu_custom_call.1} parent=1 // pred_region
      %1136 = dma.done [#allocation13], 128
    $region65: #{tpu_custom_call.1} parent=1 // pred_fallthru
      _
    // Predicated region
    $region66: #{tpu_custom_call.1} parent=1 // pred_check
      _
    $region67: #{tpu_custom_call.1} parent=1 // pred_check_branch
      %1138 = sbr.rel (0) target = $region69
    $region68: #{tpu_custom_call.1} parent=1 // pred_region
      %1140 = dma.done [#allocation13], 128
    $region69: #{tpu_custom_call.1} parent=1 // pred_fallthru
      _
    %1141 = vsyncpa [#allocation3], 1
    %1142 = vsyncpa [#allocation6], 1
    %1143 = vsyncpa [#allocation9], 1
    %1144 = vsyncpa [#allocation4], 1
    %1145 = vsyncpa [#allocation13], 1

</llo_original>
